<compile_context>
chip_gen: v7x
topology: tpu7x:2x2x1
jax: 0.10.0
libtpu: 0.0.40
codegen_flags: <defaults>
</compile_context>

<pallas_src>
import functools

import jax
import jax.numpy as jnp
import numpy as np
from jax.experimental import pallas as pl
from jax.experimental.pallas import tpu as pltpu  # noqa: F401  (no pltpu-specific API needed at this size)

# ---- module-consistent sizes ----
N = 2               # batch
C = 32              # inplanes == planes (downsample=None requires equal channels)
L = 128             # 1-D signal length (lane-dense)
RED = 16            # SE reduction (module default)
SE_H = C // RED     # SE hidden dim = 2
BN_EPS = 1e-5       # torch BatchNorm1d default eps

# ---- packed parameter slab: ONE lane-dense (2*C, 128) f32 buffer ----
SLAB_ROWS = 2 * C        # 64 sublanes (multiple of 8)
SLAB_LANES = 128         # lane-dense last dim
BIAS_LANE = C            # folded biases stored as columns right next to their weights
SE1_LANE = 40            # Wse1^T  stored as (C, SE_H)
SE2_LANE = 48            # Wse2    stored as (C, SE_H)


def se_basic_block_kernel(x_ref, p_ref, o_ref, *, precision, approx_recip):
    """x_ref: (C, N*L) activations; p_ref: (2C, 128) packed params; o_ref: (C, N*L)."""
    x = x_ref[...]                                              # (C, N*L) f32

    # Static views into the single packed parameter slab (one DMA for all 16 raw tensors).
    w1 = p_ref[0:C, 0:C]                                        # conv1 weight, BN1 folded
    w2 = p_ref[C:2 * C, 0:C]                                    # conv2 weight, BN2 folded
    b1 = p_ref[0:C, BIAS_LANE:BIAS_LANE + 1]                    # (C,1) folded bias columns
    b2 = p_ref[C:2 * C, BIAS_LANE:BIAS_LANE + 1]
    wse1t = p_ref[0:C, SE1_LANE:SE1_LANE + SE_H]                # (C, SE_H) = SE fc1 weight^T
    wse2 = p_ref[0:C, SE2_LANE:SE2_LANE + SE_H]                 # (C, SE_H) = SE fc2 weight

    # conv1 (k=1) + folded BN1 + ReLU, conv2 (k=1) + folded BN2:
    # dense (C,C)@(C,N*L) MXU matmuls shared across the whole batch.
    y = jnp.dot(w1, x, precision=precision,
                preferred_element_type=jnp.float32) + b1
    y = jnp.maximum(y, 0.0)
    z = jnp.dot(w2, y, precision=precision,
                preferred_element_type=jnp.float32) + b2

    # SE + residual + final ReLU, per batch.  n*L is a 128-aligned static lane offset, so
    # these slices are free tile-aligned views and the stores stay unmasked and lane-dense.
    for n in range(N):
        sl = slice(n * L, (n + 1) * L)
        zn = z[:, sl]                                           # (C, L)
        avg = jnp.mean(zn, axis=1, keepdims=True)               # (C, 1) global average pool
        # SE FCs kept OFF the MXU (their outputs are 1 lane wide): VPU multiply + reduce.
        t = jnp.zeros((C, 1), jnp.float32)
        for j in range(SE_H):
            hj = jnp.sum(wse1t[:, j:j + 1] * avg, keepdims=True)   # (1,1): fc1 output j
            hj = jnp.maximum(hj, 0.0)                               # ReLU
            t = t + wse2[:, j:j + 1] * hj                           # fc2 accumulation
        e = jnp.exp(-t)                                         # EUP
        if approx_recip:
            s = pl.reciprocal(1.0 + e, approx=True)             # sigmoid denom on the EUP slot
        else:
            s = 1.0 / (1.0 + e)
        # SE scale + residual (downsample=None -> residual = x) + final ReLU
        o_ref[:, sl] = jnp.maximum(zn * s + x[:, sl], 0.0).astype(o_ref.dtype)
    # TODO(synk): downsample is an arbitrary user-supplied module; only the None path is implemented.


def build_se_basic_block(precision=None, approx_recip=True):
    kernel = functools.partial(se_basic_block_kernel,
                               precision=precision, approx_recip=approx_recip)
    call = pl.pallas_call(
        kernel,
        out_shape=jax.ShapeDtypeStruct((C, N * L), jnp.float32),
        # No grid: single invocation, whole arrays in VMEM, single-buffered (no pipelining
        # machinery needed for ~100 KiB of traffic).
        input_output_aliases={0: 0},   # output reuses the (C, N*L) activation HBM buffer
    )

    @jax.jit
    def run(x, params_slab):
        # Layout plumbing: fold batch into the lane axis -> (C, N*L), lane-dense.
        x2 = jnp.transpose(x, (1, 0, 2)).reshape(C, N * L)
        out = call(x2, params_slab)
        return jnp.transpose(out.reshape(C, N, L), (1, 0, 2))

    return run


# ---------------- parameters: raw (PyTorch-style) + one-time packing ----------------

def init_raw_params(key):
    ks = jax.random.split(key, 14)
    rnd = lambda k, shape, s=0.1: (s * jax.random.normal(k, shape)).astype(jnp.float32)
    W1, b1 = rnd(ks[0], (C, C), 0.2), rnd(ks[1], (C,))      # conv1 weight (out,in), k=1 squeezed
    W2, b2 = rnd(ks[2], (C, C), 0.2), rnd(ks[3], (C,))      # conv2 weight / bias
    g1 = (1.0 + 0.1 * jax.random.normal(ks[4], (C,))).astype(jnp.float32)
    be1, m1 = rnd(ks[5], (C,)), rnd(ks[6], (C,))
    v1 = jax.random.uniform(ks[7], (C,), jnp.float32, 0.5, 1.5)
    g2 = (1.0 + 0.1 * jax.random.normal(ks[8], (C,))).astype(jnp.float32)
    be2, m2 = rnd(ks[9], (C,)), rnd(ks[10], (C,))
    v2 = jax.random.uniform(ks[11], (C,), jnp.float32, 0.5, 1.5)
    Wse1 = rnd(ks[12], (SE_H, C), 0.3)                      # Linear(C, C//r), no bias
    Wse2 = rnd(ks[13], (C, SE_H), 0.3)                      # Linear(C//r, C), no bias
    return (W1, b1, g1, be1, m1, v1, W2, b2, g2, be2, m2, v2, Wse1, Wse2)


def pack_params(raw):
    """One-time host-side transform: fold eval-mode BN into the 1x1 convs and pack every
    parameter into a single lane-dense (2C, 128) f32 slab (2 input DMAs total)."""
    (W1, b1, g1, be1, m1, v1, W2, b2, g2, be2, m2, v2, Wse1, Wse2) = raw
    s1 = g1 / jnp.sqrt(v1 + BN_EPS)
    s2 = g2 / jnp.sqrt(v2 + BN_EPS)
    W1f, b1f = s1[:, None] * W1, s1 * (b1 - m1) + be1
    W2f, b2f = s2[:, None] * W2, s2 * (b2 - m2) + be2
    slab = jnp.zeros((SLAB_ROWS, SLAB_LANES), jnp.float32)
    slab = slab.at[0:C, 0:C].set(W1f)
    slab = slab.at[C:2 * C, 0:C].set(W2f)
    slab = slab.at[0:C, BIAS_LANE].set(b1f)
    slab = slab.at[C:2 * C, BIAS_LANE].set(b2f)
    slab = slab.at[0:C, SE1_LANE:SE1_LANE + SE_H].set(Wse1.T)
    slab = slab.at[0:C, SE2_LANE:SE2_LANE + SE_H].set(Wse2)
    return slab


# ---------------- pure-JAX reference (faithful: BN NOT folded, full precision) ----------------

def reference(x, raw):
    HP = jax.lax.Precision.HIGHEST
    (W1, b1, g1, be1, m1, v1, W2, b2, g2, be2, m2, v2, Wse1, Wse2) = raw

    def bn(y, g, be, m, v):
        return (y - m[None, :, None]) / jnp.sqrt(v + BN_EPS)[None, :, None] \
               * g[None, :, None] + be[None, :, None]

    y = jnp.einsum('oi,nil->nol', W1, x, precision=HP) + b1[None, :, None]   # conv1 (k=1)
    y = jax.nn.relu(bn(y, g1, be1, m1, v1))
    z = jnp.einsum('oi,nil->nol', W2, y, precision=HP) + b2[None, :, None]   # conv2 (k=1)
    z = bn(z, g2, be2, m2, v2)
    avg = z.mean(-1)                                                         # (N, C)
    h = jax.nn.relu(jnp.einsum('nc,hc->nh', avg, Wse1, precision=HP))
    s = jax.nn.sigmoid(jnp.einsum('nh,ch->nc', h, Wse2, precision=HP))
    return jax.nn.relu(z * s[:, :, None] + x)                                # residual = x


if __name__ == "__main__":
    key = jax.random.PRNGKey(0)
    kx, kp = jax.random.split(key)
    x = jax.random.normal(kx, (N, C, L), jnp.float32)
    raw = init_raw_params(kp)
    slab = pack_params(raw)

    ref = jax.block_until_ready(reference(x, raw))

    # 1) Verification build: HIGHEST MXU precision + exact reciprocal -> tight check.
    verify = build_se_basic_block(precision=jax.lax.Precision.HIGHEST, approx_recip=False)
    out_v = jax.block_until_ready(verify(x, slab))
    assert out_v.shape == (N, C, L)
    np.testing.assert_allclose(np.asarray(out_v), np.asarray(ref), atol=2e-4, rtol=2e-4)

    # 2) Production build: default MXU precision + EUP approx reciprocal (perf path).
    #    Tolerance relaxed per review: default precision rounds MXU operands to bf16 internally.
    prod = build_se_basic_block(precision=None, approx_recip=True)
    out_p = jax.block_until_ready(prod(x, slab))
    assert out_p.shape == (N, C, L)
    np.testing.assert_allclose(np.asarray(out_p), np.asarray(ref), atol=5e-2, rtol=5e-2)

    print("KERNEL_OK")
</pallas_src>

<mosaic_0001>
module attributes {stable_mosaic.version = 11 : i64} {
  func.func @se_basic_block_kernel(%arg0: memref<32x256xf32, #tpu.memory_space<vmem>>, %arg1: memref<64x128xf32, #tpu.memory_space<vmem>>, %arg2: memref<32x256xf32, #tpu.memory_space<vmem>>) attributes {dimension_semantics = [], scalar_prefetch = 0 : i64, scratch_operands = 0 : i64, tpu.core_type = #tpu.core_type<tc>} {
    %c0 = arith.constant 0 : index
    %c0_0 = arith.constant 0 : index
    %0 = vector.load %arg0[%c0, %c0_0] : memref<32x256xf32, #tpu.memory_space<vmem>>, vector<32x256xf32>
    %c0_1 = arith.constant 0 : index
    %c0_2 = arith.constant 0 : index
    %1 = vector.load %arg1[%c0_1, %c0_2] : memref<64x128xf32, #tpu.memory_space<vmem>>, vector<32x32xf32>
    %c32 = arith.constant 32 : index
    %c0_3 = arith.constant 0 : index
    %2 = vector.load %arg1[%c32, %c0_3] : memref<64x128xf32, #tpu.memory_space<vmem>>, vector<32x32xf32>
    %c0_4 = arith.constant 0 : index
    %c32_5 = arith.constant 32 : index
    %3 = vector.load %arg1[%c0_4, %c32_5] : memref<64x128xf32, #tpu.memory_space<vmem>>, vector<32x1xf32>
    %c32_6 = arith.constant 32 : index
    %c32_7 = arith.constant 32 : index
    %4 = vector.load %arg1[%c32_6, %c32_7] : memref<64x128xf32, #tpu.memory_space<vmem>>, vector<32x1xf32>
    %c0_8 = arith.constant 0 : index
    %c40 = arith.constant 40 : index
    %5 = vector.load %arg1[%c0_8, %c40] : memref<64x128xf32, #tpu.memory_space<vmem>>, vector<32x2xf32>
    %c0_9 = arith.constant 0 : index
    %c48 = arith.constant 48 : index
    %6 = vector.load %arg1[%c0_9, %c48] : memref<64x128xf32, #tpu.memory_space<vmem>>, vector<32x2xf32>
    %cst = arith.constant dense<0.000000e+00> : vector<32x256xf32>
    %7 = tpu.matmul %1, %0, %cst {dimension_numbers = #tpu.dot_dimension_numbers<[1], [0], [0], [1], [0, 0, 1, 1], [], []>, precision = #tpu.contract_precision<fp32>} : vector<32x32xf32>, vector<32x256xf32>, vector<32x256xf32> -> vector<32x256xf32>
    %8 = vector.broadcast %3 : vector<32x1xf32> to vector<32x256xf32>
    %9 = arith.addf %7, %8 : vector<32x256xf32>
    %cst_10 = arith.constant 0.000000e+00 : f32
    %10 = vector.broadcast %cst_10 : f32 to vector<32x256xf32>
    %11 = arith.maximumf %9, %10 : vector<32x256xf32>
    %cst_11 = arith.constant dense<0.000000e+00> : vector<32x256xf32>
    %12 = tpu.matmul %2, %11, %cst_11 {dimension_numbers = #tpu.dot_dimension_numbers<[1], [0], [0], [1], [0, 0, 1, 1], [], []>, precision = #tpu.contract_precision<fp32>} : vector<32x32xf32>, vector<32x256xf32>, vector<32x256xf32> -> vector<32x256xf32>
    %13 = vector.broadcast %4 : vector<32x1xf32> to vector<32x256xf32>
    %14 = arith.addf %12, %13 : vector<32x256xf32>
    %15 = vector.extract_strided_slice %14 {offsets = [0, 0], sizes = [32, 128], strides = [1, 1]} : vector<32x256xf32> to vector<32x128xf32>
    %cst_12 = arith.constant dense<0.000000e+00> : vector<32xf32>
    %16 = vector.multi_reduction <add>, %15, %cst_12 [1] : vector<32x128xf32> to vector<32xf32>
    %17 = vector.shape_cast %16 : vector<32xf32> to vector<32x1xf32>
    %cst_13 = arith.constant 1.280000e+02 : f32
    %18 = vector.broadcast %cst_13 : f32 to vector<32x1xf32>
    %19 = arith.divf %17, %18 : vector<32x1xf32>
    %cst_14 = arith.constant 0.000000e+00 : f32
    %20 = vector.broadcast %cst_14 : f32 to vector<32x1xf32>
    %21 = vector.extract_strided_slice %5 {offsets = [0, 0], sizes = [32, 1], strides = [1, 1]} : vector<32x2xf32> to vector<32x1xf32>
    %22 = arith.mulf %21, %19 : vector<32x1xf32>
    %23 = vector.shape_cast %22 : vector<32x1xf32> to vector<1x32x1xf32>
    %cst_15 = arith.constant dense<0.000000e+00> : vector<1xf32>
    %24 = vector.multi_reduction <add>, %23, %cst_15 [1, 2] : vector<1x32x1xf32> to vector<1xf32>
    %25 = vector.shape_cast %24 : vector<1xf32> to vector<1x1x1xf32>
    %26 = vector.extract %25[0, 0, 0] : f32 from vector<1x1x1xf32>
    %27 = vector.broadcast %26 : f32 to vector<1x1xf32>
    %cst_16 = arith.constant 0.000000e+00 : f32
    %28 = vector.broadcast %cst_16 : f32 to vector<1x1xf32>
    %29 = arith.maximumf %27, %28 : vector<1x1xf32>
    %30 = vector.extract_strided_slice %6 {offsets = [0, 0], sizes = [32, 1], strides = [1, 1]} : vector<32x2xf32> to vector<32x1xf32>
    %31 = vector.broadcast %29 : vector<1x1xf32> to vector<32x1xf32>
    %32 = arith.mulf %30, %31 : vector<32x1xf32>
    %33 = arith.addf %20, %32 : vector<32x1xf32>
    %34 = vector.extract_strided_slice %5 {offsets = [0, 1], sizes = [32, 1], strides = [1, 1]} : vector<32x2xf32> to vector<32x1xf32>
    %35 = arith.mulf %34, %19 : vector<32x1xf32>
    %36 = vector.shape_cast %35 : vector<32x1xf32> to vector<1x32x1xf32>
    %cst_17 = arith.constant dense<0.000000e+00> : vector<1xf32>
    %37 = vector.multi_reduction <add>, %36, %cst_17 [1, 2] : vector<1x32x1xf32> to vector<1xf32>
    %38 = vector.shape_cast %37 : vector<1xf32> to vector<1x1x1xf32>
    %39 = vector.extract %38[0, 0, 0] : f32 from vector<1x1x1xf32>
    %40 = vector.broadcast %39 : f32 to vector<1x1xf32>
    %cst_18 = arith.constant 0.000000e+00 : f32
    %41 = vector.broadcast %cst_18 : f32 to vector<1x1xf32>
    %42 = arith.maximumf %40, %41 : vector<1x1xf32>
    %43 = vector.extract_strided_slice %6 {offsets = [0, 1], sizes = [32, 1], strides = [1, 1]} : vector<32x2xf32> to vector<32x1xf32>
    %44 = vector.broadcast %42 : vector<1x1xf32> to vector<32x1xf32>
    %45 = arith.mulf %43, %44 : vector<32x1xf32>
    %46 = arith.addf %33, %45 : vector<32x1xf32>
    %cst_19 = arith.constant 0.000000e+00 : f32
    %47 = vector.broadcast %cst_19 : f32 to vector<32x1xf32>
    %48 = arith.subf %47, %46 : vector<32x1xf32>
    %49 = math.exp %48 : vector<32x1xf32>
    %cst_20 = arith.constant 1.000000e+00 : f32
    %50 = vector.broadcast %cst_20 : f32 to vector<32x1xf32>
    %51 = arith.addf %50, %49 : vector<32x1xf32>
    %cst_21 = arith.constant 1.000000e+00 : f32
    %52 = vector.broadcast %cst_21 : f32 to vector<32x1xf32>
    %53 = arith.divf %52, %51 : vector<32x1xf32>
    %54 = vector.broadcast %53 : vector<32x1xf32> to vector<32x128xf32>
    %55 = arith.mulf %15, %54 : vector<32x128xf32>
    %56 = vector.extract_strided_slice %0 {offsets = [0, 0], sizes = [32, 128], strides = [1, 1]} : vector<32x256xf32> to vector<32x128xf32>
    %57 = arith.addf %55, %56 : vector<32x128xf32>
    %cst_22 = arith.constant 0.000000e+00 : f32
    %58 = vector.broadcast %cst_22 : f32 to vector<32x128xf32>
    %59 = arith.maximumf %57, %58 : vector<32x128xf32>
    %c0_23 = arith.constant 0 : index
    %c0_24 = arith.constant 0 : index
    %60 = vector.load %arg2[%c0_23, %c0_24] : memref<32x256xf32, #tpu.memory_space<vmem>>, vector<32x128xf32>
    tpu.vector_store %arg2[%c0_23, %c0_24], %59 {strides = array<i32>} : memref<32x256xf32, #tpu.memory_space<vmem>>, vector<32x128xf32>,
    %61 = vector.extract_strided_slice %14 {offsets = [0, 128], sizes = [32, 128], strides = [1, 1]} : vector<32x256xf32> to vector<32x128xf32>
    %cst_25 = arith.constant dense<0.000000e+00> : vector<32xf32>
    %62 = vector.multi_reduction <add>, %61, %cst_25 [1] : vector<32x128xf32> to vector<32xf32>
    %63 = vector.shape_cast %62 : vector<32xf32> to vector<32x1xf32>
    %cst_26 = arith.constant 1.280000e+02 : f32
    %64 = vector.broadcast %cst_26 : f32 to vector<32x1xf32>
    %65 = arith.divf %63, %64 : vector<32x1xf32>
    %cst_27 = arith.constant 0.000000e+00 : f32
    %66 = vector.broadcast %cst_27 : f32 to vector<32x1xf32>
    %67 = vector.extract_strided_slice %5 {offsets = [0, 0], sizes = [32, 1], strides = [1, 1]} : vector<32x2xf32> to vector<32x1xf32>
    %68 = arith.mulf %67, %65 : vector<32x1xf32>
    %69 = vector.shape_cast %68 : vector<32x1xf32> to vector<1x32x1xf32>
    %cst_28 = arith.constant dense<0.000000e+00> : vector<1xf32>
    %70 = vector.multi_reduction <add>, %69, %cst_28 [1, 2] : vector<1x32x1xf32> to vector<1xf32>
    %71 = vector.shape_cast %70 : vector<1xf32> to vector<1x1x1xf32>
    %72 = vector.extract %71[0, 0, 0] : f32 from vector<1x1x1xf32>
    %73 = vector.broadcast %72 : f32 to vector<1x1xf32>
    %cst_29 = arith.constant 0.000000e+00 : f32
    %74 = vector.broadcast %cst_29 : f32 to vector<1x1xf32>
    %75 = arith.maximumf %73, %74 : vector<1x1xf32>
    %76 = vector.extract_strided_slice %6 {offsets = [0, 0], sizes = [32, 1], strides = [1, 1]} : vector<32x2xf32> to vector<32x1xf32>
    %77 = vector.broadcast %75 : vector<1x1xf32> to vector<32x1xf32>
    %78 = arith.mulf %76, %77 : vector<32x1xf32>
    %79 = arith.addf %66, %78 : vector<32x1xf32>
    %80 = vector.extract_strided_slice %5 {offsets = [0, 1], sizes = [32, 1], strides = [1, 1]} : vector<32x2xf32> to vector<32x1xf32>
    %81 = arith.mulf %80, %65 : vector<32x1xf32>
    %82 = vector.shape_cast %81 : vector<32x1xf32> to vector<1x32x1xf32>
    %cst_30 = arith.constant dense<0.000000e+00> : vector<1xf32>
    %83 = vector.multi_reduction <add>, %82, %cst_30 [1, 2] : vector<1x32x1xf32> to vector<1xf32>
    %84 = vector.shape_cast %83 : vector<1xf32> to vector<1x1x1xf32>
    %85 = vector.extract %84[0, 0, 0] : f32 from vector<1x1x1xf32>
    %86 = vector.broadcast %85 : f32 to vector<1x1xf32>
    %cst_31 = arith.constant 0.000000e+00 : f32
    %87 = vector.broadcast %cst_31 : f32 to vector<1x1xf32>
    %88 = arith.maximumf %86, %87 : vector<1x1xf32>
    %89 = vector.extract_strided_slice %6 {offsets = [0, 1], sizes = [32, 1], strides = [1, 1]} : vector<32x2xf32> to vector<32x1xf32>
    %90 = vector.broadcast %88 : vector<1x1xf32> to vector<32x1xf32>
    %91 = arith.mulf %89, %90 : vector<32x1xf32>
    %92 = arith.addf %79, %91 : vector<32x1xf32>
    %cst_32 = arith.constant 0.000000e+00 : f32
    %93 = vector.broadcast %cst_32 : f32 to vector<32x1xf32>
    %94 = arith.subf %93, %92 : vector<32x1xf32>
    %95 = math.exp %94 : vector<32x1xf32>
    %cst_33 = arith.constant 1.000000e+00 : f32
    %96 = vector.broadcast %cst_33 : f32 to vector<32x1xf32>
    %97 = arith.addf %96, %95 : vector<32x1xf32>
    %cst_34 = arith.constant 1.000000e+00 : f32
    %98 = vector.broadcast %cst_34 : f32 to vector<32x1xf32>
    %99 = arith.divf %98, %97 : vector<32x1xf32>
    %100 = vector.broadcast %99 : vector<32x1xf32> to vector<32x128xf32>
    %101 = arith.mulf %61, %100 : vector<32x128xf32>
    %102 = vector.extract_strided_slice %0 {offsets = [0, 128], sizes = [32, 128], strides = [1, 1]} : vector<32x256xf32> to vector<32x128xf32>
    %103 = arith.addf %101, %102 : vector<32x128xf32>
    %cst_35 = arith.constant 0.000000e+00 : f32
    %104 = vector.broadcast %cst_35 : f32 to vector<32x128xf32>
    %105 = arith.maximumf %103, %104 : vector<32x128xf32>
    %c0_36 = arith.constant 0 : index
    %c128 = arith.constant 128 : index
    %106 = vector.load %arg2[%c0_36, %c128] : memref<32x256xf32, #tpu.memory_space<vmem>>, vector<32x128xf32>
    tpu.vector_store %arg2[%c0_36, %c128], %105 {strides = array<i32>} : memref<32x256xf32, #tpu.memory_space<vmem>>, vector<32x128xf32>,
    return
  }
}

</mosaic_0001>

<llo_original>
// kernel: run.1
$region0: #{run.1}
  #allocation0 [shape = 'u32[]', space=smem, size = 0x4, offset = 0x4, fixed_abs, tag = 'smem constant byte address 0x4 - core index']
  #allocation1 [shape = 'u32[144,128]{1,0:T(1,128)}', space=vmem, size = 0x12000, scoped, tag = 'internal scratch']
  %s0 = inlined_call_operand.vmem [shape: f32[32,256], index: 0, kind: input, shape index: {}, may-alias: {0,2}]
  %s1 = inlined_call_operand.vmem [shape: f32[64,128], index: 1, kind: input, shape index: {}]
  %s2 = inlined_call_operand.vmem [shape: f32[32,256], index: 2, kind: output, shape index: {}, may-alias: {0,2}]
  %s3 = sld [smem:[#allocation0]]
  $region18: #{run.1} parent=0
    _
  %s5 = ssub.s32 1, %s3
  %s6 = scalar_select 0, %s5, %s3
  // Predicated region
  $region2: #{run.1} parent=0 // pred_check
    _
  $region3: #{run.1} parent=0 // pred_check_branch
    %8 = sbr.rel (0) target = $region5
  $region4: #{run.1} parent=0 // pred_region
    _
  $region5: #{run.1} parent=0 // pred_fallthru
    _
  // Predicated region
  $region6: #{run.1} parent=0 // pred_check
    _
  $region7: #{run.1} parent=0 // pred_check_branch
    %10 = sbr.rel (0) target = $region9
  $region8: #{run.1} parent=0 // pred_region
    _
  $region9: #{run.1} parent=0 // pred_fallthru
    _
  %v11 = vld [vmem:[%s0] sm:$0xff]
  %v12 = vld [vmem:[%s0 + $0x8] sm:$0xff]
  %v13 = vld [vmem:[%s0 + $0x10] sm:$0xff]
  %v14 = vld [vmem:[%s0 + $0x18] sm:$0xff]
  %v15 = vld [vmem:[%s0 + $0x20] sm:$0xff]
  %v16 = vld [vmem:[%s0 + $0x28] sm:$0xff]
  %v17 = vld [vmem:[%s0 + $0x30] sm:$0xff]
  %v18 = vld [vmem:[%s0 + $0x38] sm:$0xff]
  %v19 = vld [vmem:[%s1] sm:$0xff]
  %v20 = vld [vmem:[%s1 + $0x8] sm:$0xff]
  %v21 = vld [vmem:[%s1 + $0x10] sm:$0xff]
  %v22 = vld [vmem:[%s1 + $0x18] sm:$0xff]
  %v23 = vld [vmem:[%s1 + $0x20] sm:$0xff]
  %v24 = vld [vmem:[%s1 + $0x28] sm:$0xff]
  %v25 = vld [vmem:[%s1 + $0x30] sm:$0xff]
  %v26 = vld [vmem:[%s1 + $0x38] sm:$0xff]
  %28 = vset.pattern.permute.xlu0 32
  %29 = vperm.xlu0 %28, %v19
  %v30 = vpop.permute.xlu0 %29
  %33 = vset.pattern.permute.xlu0 32
  %34 = vperm.xlu0 %33, %v20
  %v35 = vpop.permute.xlu0 %34
  %38 = vset.pattern.permute.xlu0 32
  %39 = vperm.xlu0 %38, %v21
  %v40 = vpop.permute.xlu0 %39
  %43 = vset.pattern.permute.xlu0 32
  %44 = vperm.xlu0 %43, %v22
  %v45 = vpop.permute.xlu0 %44
  %vm47 = vcmask 261120
  %v48 = vsel %vm47, %v19, 0
  %v50 = vsel %vm47, %v20, 0
  %v52 = vsel %vm47, %v21, 0
  %v54 = vsel %vm47, %v22, 0
  %v56 = vand.u32 %v12, 4294901760
  %57 = vmatprep.subr.mxu0 %v56
  %v58 = vand.u32 %v11, 4294901760
  %59 = vmatpush1.msra.mxu0 %v58
  %v60 = vand.u32 %v14, 4294901760
  %61 = vmatprep.subr.mxu0 %v60
  %v62 = vand.u32 %v13, 4294901760
  %63 = vmatpush1.msra.mxu0 %v62
  %v64 = vand.u32 %v16, 4294901760
  %65 = vmatprep.subr.mxu0 %v64
  %v66 = vand.u32 %v15, 4294901760
  %67 = vmatpush1.msra.mxu0 %v66
  %v68 = vand.u32 %v18, 4294901760
  %69 = vmatprep.subr.mxu0 %v68
  %v70 = vand.u32 %v17, 4294901760
  %71 = vmatpush1.msra.mxu0 %v70
  %72 = vmatprep.subr.mxu0 0.0
  %73 = vmatpush1.msra.mxu0 0.0
  %74 = vmatprep.subr.mxu0 0.0
  %75 = vmatpush1.msra.mxu0 0.0
  %76 = vmatprep.subr.mxu0 0.0
  %77 = vmatpush1.msra.mxu0 0.0
  %78 = vmatprep.subr.mxu0 0.0
  %79 = vmatpush1.msra.mxu0 0.0
  %80 = vmatprep.subr.mxu0 0.0
  %81 = vmatpush1.msra.mxu0 0.0
  %82 = vmatprep.subr.mxu0 0.0
  %83 = vmatpush1.msra.mxu0 0.0
  %84 = vmatprep.subr.mxu0 0.0
  %85 = vmatpush1.msra.mxu0 0.0
  %86 = vmatprep.subr.mxu0 0.0
  %87 = vmatpush1.msra.mxu0 0.0
  %88 = vmatprep.subr.mxu0 0.0
  %89 = vmatpush1.msra.mxu0 0.0
  %90 = vmatprep.subr.mxu0 0.0
  %91 = vmatpush1.msra.mxu0 0.0
  %92 = vmatprep.subr.mxu0 0.0
  %93 = vmatpush1.msra.mxu0 0.0
  %94 = vmatprep.subr.mxu0 0.0
  %95 = vmatpush1.msra.mxu0 0.0
  %96 = vmatprep.subr.mxu0 0.0
  %97 = vmatpush1.msra.mxu0 0.0
  %98 = vmatprep.subr.mxu0 0.0
  %99 = vmatpush1.msra.mxu0 0.0
  %100 = vmatprep.subr.mxu0 0.0
  %101 = vmatpush1.msra.mxu0 0.0
  %102 = vmatprep.subr.mxu0 0.0
  %103 = vmatpush1.msra.mxu0 0.0
  %104 = vmatprep.subr.mxu0 0.0
  %105 = vmatpush1.msra.mxu0 0.0
  %106 = vmatprep.subr.mxu0 0.0
  %107 = vmatpush1.msra.mxu0 0.0
  %108 = vmatprep.subr.mxu0 0.0
  %109 = vmatpush1.msra.mxu0 0.0
  %110 = vmatprep.subr.mxu0 0.0
  %111 = vmatpush1.msra.mxu0 0.0
  %112 = vmatprep.subr.mxu0 0.0
  %113 = vmatpush1.msra.mxu0 0.0
  %114 = vmatprep.subr.mxu0 0.0
  %115 = vmatpush1.msra.mxu0 0.0
  %116 = vmatprep.subr.mxu0 0.0
  %117 = vmatpush1.msra.mxu0 0.0
  %118 = vmatprep.subr.mxu0 0.0
  %119 = vmatpush1.msra.mxu0 0.0
  %120 = vmatprep.subr.mxu0 0.0
  %121 = vmatpush1.msra.mxu0 0.0
  %122 = vmatprep.subr.mxu0 0.0
  %123 = vmatpush1.msra.mxu0 0.0
  %124 = vmatprep.subr.mxu0 0.0
  %125 = vmatpush1.msra.mxu0 0.0
  %126 = vmatprep.subr.mxu0 0.0
  %127 = vmatpush1.msra.mxu0 0.0
  %128 = vmatprep.mubr.f32.mxu0 0.0
  %v129 = vand.u32 %v48, 4294901760
  %v130 = vsub.f32 %v48, %v129
  %v131 = vand.u32 %v130, 4294901760
  %v132 = vsub.f32 %v130, %v131
  %v133 = vand.u32 %v132, 4294901760
  %134 = vmatmul.mubr.f32.gmra.mrb[0].mxu0 %v133
  %v135 = vpop.f32.mrb[0].mxu0
  %v136 = vadd.f32 %v30, %v135
  %v137 = vpop.f32.mrb[0].mxu0
  %v138 = vadd.f32 %v30, %v137
  %139 = vmatprep.mubr.f32.mxu0 0.0
  %v140 = vand.u32 %v50, 4294901760
  %v141 = vsub.f32 %v50, %v140
  %v142 = vand.u32 %v141, 4294901760
  %v143 = vsub.f32 %v141, %v142
  %v144 = vand.u32 %v143, 4294901760
  %145 = vmatmul.mubr.f32.gmra.mrb[0].mxu0 %v144
  %v146 = vpop.f32.mrb[0].mxu0
  %v147 = vadd.f32 %v35, %v146
  %v148 = vpop.f32.mrb[0].mxu0
  %v149 = vadd.f32 %v35, %v148
  %150 = vmatprep.mubr.f32.mxu0 0.0
  %v151 = vand.u32 %v52, 4294901760
  %v152 = vsub.f32 %v52, %v151
  %v153 = vand.u32 %v152, 4294901760
  %v154 = vsub.f32 %v152, %v153
  %v155 = vand.u32 %v154, 4294901760
  %156 = vmatmul.mubr.f32.gmra.mrb[0].mxu0 %v155
  %v157 = vpop.f32.mrb[0].mxu0
  %v158 = vadd.f32 %v40, %v157
  %v159 = vpop.f32.mrb[0].mxu0
  %v160 = vadd.f32 %v40, %v159
  %161 = vmatprep.mubr.f32.mxu0 0.0
  %v162 = vand.u32 %v54, 4294901760
  %v163 = vsub.f32 %v54, %v162
  %v164 = vand.u32 %v163, 4294901760
  %v165 = vsub.f32 %v163, %v164
  %v166 = vand.u32 %v165, 4294901760
  %167 = vmatmul.mubr.f32.gmra.mrb[0].mxu0 %v166
  %v168 = vpop.f32.mrb[0].mxu0
  %v169 = vadd.f32 %v45, %v168
  %v170 = vpop.f32.mrb[0].mxu0
  %v171 = vadd.f32 %v45, %v170
  %172 = vdwg.mxu0
  %v173 = vand.u32 %v12, 4294901760
  %v174 = vsub.f32 %v12, %v173
  %v175 = vand.u32 %v174, 4294901760
  %v176 = vsub.f32 %v174, %v175
  %v177 = vand.u32 %v176, 4294901760
  %178 = vmatprep.subr.mxu0 %v177
  %v179 = vand.u32 %v11, 4294901760
  %v180 = vsub.f32 %v11, %v179
  %v181 = vand.u32 %v180, 4294901760
  %v182 = vsub.f32 %v180, %v181
  %v183 = vand.u32 %v182, 4294901760
  %184 = vmatpush1.msra.mxu0 %v183
  %v185 = vand.u32 %v14, 4294901760
  %v186 = vsub.f32 %v14, %v185
  %v187 = vand.u32 %v186, 4294901760
  %v188 = vsub.f32 %v186, %v187
  %v189 = vand.u32 %v188, 4294901760
  %190 = vmatprep.subr.mxu0 %v189
  %v191 = vand.u32 %v13, 4294901760
  %v192 = vsub.f32 %v13, %v191
  %v193 = vand.u32 %v192, 4294901760
  %v194 = vsub.f32 %v192, %v193
  %v195 = vand.u32 %v194, 4294901760
  %196 = vmatpush1.msra.mxu0 %v195
  %v197 = vand.u32 %v16, 4294901760
  %v198 = vsub.f32 %v16, %v197
  %v199 = vand.u32 %v198, 4294901760
  %v200 = vsub.f32 %v198, %v199
  %v201 = vand.u32 %v200, 4294901760
  %202 = vmatprep.subr.mxu0 %v201
  %v203 = vand.u32 %v15, 4294901760
  %v204 = vsub.f32 %v15, %v203
  %v205 = vand.u32 %v204, 4294901760
  %v206 = vsub.f32 %v204, %v205
  %v207 = vand.u32 %v206, 4294901760
  %208 = vmatpush1.msra.mxu0 %v207
  %v209 = vand.u32 %v18, 4294901760
  %v210 = vsub.f32 %v18, %v209
  %v211 = vand.u32 %v210, 4294901760
  %v212 = vsub.f32 %v210, %v211
  %v213 = vand.u32 %v212, 4294901760
  %214 = vmatprep.subr.mxu0 %v213
  %v215 = vand.u32 %v17, 4294901760
  %v216 = vsub.f32 %v17, %v215
  %v217 = vand.u32 %v216, 4294901760
  %v218 = vsub.f32 %v216, %v217
  %v219 = vand.u32 %v218, 4294901760
  %220 = vmatpush1.msra.mxu0 %v219
  %221 = vmatprep.subr.mxu0 0.0
  %222 = vmatpush1.msra.mxu0 0.0
  %223 = vmatprep.subr.mxu0 0.0
  %224 = vmatpush1.msra.mxu0 0.0
  %225 = vmatprep.subr.mxu0 0.0
  %226 = vmatpush1.msra.mxu0 0.0
  %227 = vmatprep.subr.mxu0 0.0
  %228 = vmatpush1.msra.mxu0 0.0
  %229 = vmatprep.subr.mxu0 0.0
  %230 = vmatpush1.msra.mxu0 0.0
  %231 = vmatprep.subr.mxu0 0.0
  %232 = vmatpush1.msra.mxu0 0.0
  %233 = vmatprep.subr.mxu0 0.0
  %234 = vmatpush1.msra.mxu0 0.0
  %235 = vmatprep.subr.mxu0 0.0
  %236 = vmatpush1.msra.mxu0 0.0
  %237 = vmatprep.subr.mxu0 0.0
  %238 = vmatpush1.msra.mxu0 0.0
  %239 = vmatprep.subr.mxu0 0.0
  %240 = vmatpush1.msra.mxu0 0.0
  %241 = vmatprep.subr.mxu0 0.0
  %242 = vmatpush1.msra.mxu0 0.0
  %243 = vmatprep.subr.mxu0 0.0
  %244 = vmatpush1.msra.mxu0 0.0
  %245 = vmatprep.subr.mxu0 0.0
  %246 = vmatpush1.msra.mxu0 0.0
  %247 = vmatprep.subr.mxu0 0.0
  %248 = vmatpush1.msra.mxu0 0.0
  %249 = vmatprep.subr.mxu0 0.0
  %250 = vmatpush1.msra.mxu0 0.0
  %251 = vmatprep.subr.mxu0 0.0
  %252 = vmatpush1.msra.mxu0 0.0
  %253 = vmatprep.subr.mxu0 0.0
  %254 = vmatpush1.msra.mxu0 0.0
  %255 = vmatprep.subr.mxu0 0.0
  %256 = vmatpush1.msra.mxu0 0.0
  %257 = vmatprep.subr.mxu0 0.0
  %258 = vmatpush1.msra.mxu0 0.0
  %259 = vmatprep.subr.mxu0 0.0
  %260 = vmatpush1.msra.mxu0 0.0
  %261 = vmatprep.subr.mxu0 0.0
  %262 = vmatpush1.msra.mxu0 0.0
  %263 = vmatprep.subr.mxu0 0.0
  %264 = vmatpush1.msra.mxu0 0.0
  %265 = vmatprep.subr.mxu0 0.0
  %266 = vmatpush1.msra.mxu0 0.0
  %267 = vmatprep.subr.mxu0 0.0
  %268 = vmatpush1.msra.mxu0 0.0
  %269 = vmatprep.subr.mxu0 0.0
  %270 = vmatpush1.msra.mxu0 0.0
  %271 = vmatprep.subr.mxu0 0.0
  %272 = vmatpush1.msra.mxu0 0.0
  %273 = vmatprep.subr.mxu0 0.0
  %274 = vmatpush1.msra.mxu0 0.0
  %275 = vmatprep.subr.mxu0 0.0
  %276 = vmatpush1.msra.mxu0 0.0
  %277 = vmatprep.mubr.f32.mxu0 0.0
  %v278 = vand.u32 %v48, 4294901760
  %279 = vmatmul.mubr.f32.gmra.mrb[0].mxu0 %v278
  %v280 = vpop.f32.mrb[0].mxu0
  %v281 = vadd.f32 %v136, %v280
  %v282 = vpop.f32.mrb[0].mxu0
  %v283 = vadd.f32 %v138, %v282
  %284 = vmatprep.mubr.f32.mxu0 0.0
  %v285 = vand.u32 %v50, 4294901760
  %286 = vmatmul.mubr.f32.gmra.mrb[0].mxu0 %v285
  %v287 = vpop.f32.mrb[0].mxu0
  %v288 = vadd.f32 %v147, %v287
  %v289 = vpop.f32.mrb[0].mxu0
  %v290 = vadd.f32 %v149, %v289
  %291 = vmatprep.mubr.f32.mxu0 0.0
  %v292 = vand.u32 %v52, 4294901760
  %293 = vmatmul.mubr.f32.gmra.mrb[0].mxu0 %v292
  %v294 = vpop.f32.mrb[0].mxu0
  %v295 = vadd.f32 %v158, %v294
  %v296 = vpop.f32.mrb[0].mxu0
  %v297 = vadd.f32 %v160, %v296
  %298 = vmatprep.mubr.f32.mxu0 0.0
  %v299 = vand.u32 %v54, 4294901760
  %300 = vmatmul.mubr.f32.gmra.mrb[0].mxu0 %v299
  %v301 = vpop.f32.mrb[0].mxu0
  %v302 = vadd.f32 %v169, %v301
  %v303 = vpop.f32.mrb[0].mxu0
  %v304 = vadd.f32 %v171, %v303
  %305 = vdwg.mxu0
  %v306 = vand.u32 %v12, 4294901760
  %v307 = vsub.f32 %v12, %v306
  %308 = vmatprep.subr.mxu0 %v307
  %v309 = vand.u32 %v11, 4294901760
  %v310 = vsub.f32 %v11, %v309
  %311 = vmatpush1.msra.mxu0 %v310
  %v312 = vand.u32 %v14, 4294901760
  %v313 = vsub.f32 %v14, %v312
  %314 = vmatprep.subr.mxu0 %v313
  %v315 = vand.u32 %v13, 4294901760
  %v316 = vsub.f32 %v13, %v315
  %317 = vmatpush1.msra.mxu0 %v316
  %v318 = vand.u32 %v16, 4294901760
  %v319 = vsub.f32 %v16, %v318
  %320 = vmatprep.subr.mxu0 %v319
  %v321 = vand.u32 %v15, 4294901760
  %v322 = vsub.f32 %v15, %v321
  %323 = vmatpush1.msra.mxu0 %v322
  %v324 = vand.u32 %v18, 4294901760
  %v325 = vsub.f32 %v18, %v324
  %326 = vmatprep.subr.mxu0 %v325
  %v327 = vand.u32 %v17, 4294901760
  %v328 = vsub.f32 %v17, %v327
  %329 = vmatpush1.msra.mxu0 %v328
  %330 = vmatprep.subr.mxu0 0.0
  %331 = vmatpush1.msra.mxu0 0.0
  %332 = vmatprep.subr.mxu0 0.0
  %333 = vmatpush1.msra.mxu0 0.0
  %334 = vmatprep.subr.mxu0 0.0
  %335 = vmatpush1.msra.mxu0 0.0
  %336 = vmatprep.subr.mxu0 0.0
  %337 = vmatpush1.msra.mxu0 0.0
  %338 = vmatprep.subr.mxu0 0.0
  %339 = vmatpush1.msra.mxu0 0.0
  %340 = vmatprep.subr.mxu0 0.0
  %341 = vmatpush1.msra.mxu0 0.0
  %342 = vmatprep.subr.mxu0 0.0
  %343 = vmatpush1.msra.mxu0 0.0
  %344 = vmatprep.subr.mxu0 0.0
  %345 = vmatpush1.msra.mxu0 0.0
  %346 = vmatprep.subr.mxu0 0.0
  %347 = vmatpush1.msra.mxu0 0.0
  %348 = vmatprep.subr.mxu0 0.0
  %349 = vmatpush1.msra.mxu0 0.0
  %350 = vmatprep.subr.mxu0 0.0
  %351 = vmatpush1.msra.mxu0 0.0
  %352 = vmatprep.subr.mxu0 0.0
  %353 = vmatpush1.msra.mxu0 0.0
  %354 = vmatprep.subr.mxu0 0.0
  %355 = vmatpush1.msra.mxu0 0.0
  %356 = vmatprep.subr.mxu0 0.0
  %357 = vmatpush1.msra.mxu0 0.0
  %358 = vmatprep.subr.mxu0 0.0
  %359 = vmatpush1.msra.mxu0 0.0
  %360 = vmatprep.subr.mxu0 0.0
  %361 = vmatpush1.msra.mxu0 0.0
  %362 = vmatprep.subr.mxu0 0.0
  %363 = vmatpush1.msra.mxu0 0.0
  %364 = vmatprep.subr.mxu0 0.0
  %365 = vmatpush1.msra.mxu0 0.0
  %366 = vmatprep.subr.mxu0 0.0
  %367 = vmatpush1.msra.mxu0 0.0
  %368 = vmatprep.subr.mxu0 0.0
  %369 = vmatpush1.msra.mxu0 0.0
  %370 = vmatprep.subr.mxu0 0.0
  %371 = vmatpush1.msra.mxu0 0.0
  %372 = vmatprep.subr.mxu0 0.0
  %373 = vmatpush1.msra.mxu0 0.0
  %374 = vmatprep.subr.mxu0 0.0
  %375 = vmatpush1.msra.mxu0 0.0
  %376 = vmatprep.subr.mxu0 0.0
  %377 = vmatpush1.msra.mxu0 0.0
  %378 = vmatprep.subr.mxu0 0.0
  %379 = vmatpush1.msra.mxu0 0.0
  %380 = vmatprep.subr.mxu0 0.0
  %381 = vmatpush1.msra.mxu0 0.0
  %382 = vmatprep.subr.mxu0 0.0
  %383 = vmatpush1.msra.mxu0 0.0
  %384 = vmatprep.subr.mxu0 0.0
  %385 = vmatpush1.msra.mxu0 0.0
  %386 = vmatprep.mubr.f32.mxu0 0.0
  %v387 = vand.u32 %v48, 4294901760
  %v388 = vsub.f32 %v48, %v387
  %389 = vmatmul.mubr.f32.gmra.mrb[0].mxu0 %v388
  %v390 = vpop.f32.mrb[0].mxu0
  %v391 = vadd.f32 %v281, %v390
  %v392 = vpop.f32.mrb[0].mxu0
  %v393 = vadd.f32 %v283, %v392
  %394 = vmatprep.mubr.f32.mxu0 0.0
  %v395 = vand.u32 %v50, 4294901760
  %v396 = vsub.f32 %v50, %v395
  %397 = vmatmul.mubr.f32.gmra.mrb[0].mxu0 %v396
  %v398 = vpop.f32.mrb[0].mxu0
  %v399 = vadd.f32 %v288, %v398
  %v400 = vpop.f32.mrb[0].mxu0
  %v401 = vadd.f32 %v290, %v400
  %402 = vmatprep.mubr.f32.mxu0 0.0
  %v403 = vand.u32 %v52, 4294901760
  %v404 = vsub.f32 %v52, %v403
  %405 = vmatmul.mubr.f32.gmra.mrb[0].mxu0 %v404
  %v406 = vpop.f32.mrb[0].mxu0
  %v407 = vadd.f32 %v295, %v406
  %v408 = vpop.f32.mrb[0].mxu0
  %v409 = vadd.f32 %v297, %v408
  %410 = vmatprep.mubr.f32.mxu0 0.0
  %v411 = vand.u32 %v54, 4294901760
  %v412 = vsub.f32 %v54, %v411
  %413 = vmatmul.mubr.f32.gmra.mrb[0].mxu0 %v412
  %v414 = vpop.f32.mrb[0].mxu0
  %v415 = vadd.f32 %v302, %v414
  %v416 = vpop.f32.mrb[0].mxu0
  %v417 = vadd.f32 %v304, %v416
  %418 = vdwg.mxu0
  %v419 = vand.u32 %v12, 4294901760
  %420 = vmatprep.subr.mxu0 %v419
  %v421 = vand.u32 %v11, 4294901760
  %422 = vmatpush1.msra.mxu0 %v421
  %v423 = vand.u32 %v14, 4294901760
  %424 = vmatprep.subr.mxu0 %v423
  %v425 = vand.u32 %v13, 4294901760
  %426 = vmatpush1.msra.mxu0 %v425
  %v427 = vand.u32 %v16, 4294901760
  %428 = vmatprep.subr.mxu0 %v427
  %v429 = vand.u32 %v15, 4294901760
  %430 = vmatpush1.msra.mxu0 %v429
  %v431 = vand.u32 %v18, 4294901760
  %432 = vmatprep.subr.mxu0 %v431
  %v433 = vand.u32 %v17, 4294901760
  %434 = vmatpush1.msra.mxu0 %v433
  %435 = vmatprep.subr.mxu0 0.0
  %436 = vmatpush1.msra.mxu0 0.0
  %437 = vmatprep.subr.mxu0 0.0
  %438 = vmatpush1.msra.mxu0 0.0
  %439 = vmatprep.subr.mxu0 0.0
  %440 = vmatpush1.msra.mxu0 0.0
  %441 = vmatprep.subr.mxu0 0.0
  %442 = vmatpush1.msra.mxu0 0.0
  %443 = vmatprep.subr.mxu0 0.0
  %444 = vmatpush1.msra.mxu0 0.0
  %445 = vmatprep.subr.mxu0 0.0
  %446 = vmatpush1.msra.mxu0 0.0
  %447 = vmatprep.subr.mxu0 0.0
  %448 = vmatpush1.msra.mxu0 0.0
  %449 = vmatprep.subr.mxu0 0.0
  %450 = vmatpush1.msra.mxu0 0.0
  %451 = vmatprep.subr.mxu0 0.0
  %452 = vmatpush1.msra.mxu0 0.0
  %453 = vmatprep.subr.mxu0 0.0
  %454 = vmatpush1.msra.mxu0 0.0
  %455 = vmatprep.subr.mxu0 0.0
  %456 = vmatpush1.msra.mxu0 0.0
  %457 = vmatprep.subr.mxu0 0.0
  %458 = vmatpush1.msra.mxu0 0.0
  %459 = vmatprep.subr.mxu0 0.0
  %460 = vmatpush1.msra.mxu0 0.0
  %461 = vmatprep.subr.mxu0 0.0
  %462 = vmatpush1.msra.mxu0 0.0
  %463 = vmatprep.subr.mxu0 0.0
  %464 = vmatpush1.msra.mxu0 0.0
  %465 = vmatprep.subr.mxu0 0.0
  %466 = vmatpush1.msra.mxu0 0.0
  %467 = vmatprep.subr.mxu0 0.0
  %468 = vmatpush1.msra.mxu0 0.0
  %469 = vmatprep.subr.mxu0 0.0
  %470 = vmatpush1.msra.mxu0 0.0
  %471 = vmatprep.subr.mxu0 0.0
  %472 = vmatpush1.msra.mxu0 0.0
  %473 = vmatprep.subr.mxu0 0.0
  %474 = vmatpush1.msra.mxu0 0.0
  %475 = vmatprep.subr.mxu0 0.0
  %476 = vmatpush1.msra.mxu0 0.0
  %477 = vmatprep.subr.mxu0 0.0
  %478 = vmatpush1.msra.mxu0 0.0
  %479 = vmatprep.subr.mxu0 0.0
  %480 = vmatpush1.msra.mxu0 0.0
  %481 = vmatprep.subr.mxu0 0.0
  %482 = vmatpush1.msra.mxu0 0.0
  %483 = vmatprep.subr.mxu0 0.0
  %484 = vmatpush1.msra.mxu0 0.0
  %485 = vmatprep.subr.mxu0 0.0
  %486 = vmatpush1.msra.mxu0 0.0
  %487 = vmatprep.subr.mxu0 0.0
  %488 = vmatpush1.msra.mxu0 0.0
  %489 = vmatprep.subr.mxu0 0.0
  %490 = vmatpush1.msra.mxu0 0.0
  %491 = vmatprep.mubr.f32.mxu0 0.0
  %v492 = vand.u32 %v48, 4294901760
  %v493 = vsub.f32 %v48, %v492
  %v494 = vand.u32 %v493, 4294901760
  %495 = vmatmul.mubr.f32.gmra.mrb[0].mxu0 %v494
  %v496 = vpop.f32.mrb[0].mxu0
  %v497 = vadd.f32 %v391, %v496
  %v498 = vpop.f32.mrb[0].mxu0
  %v499 = vadd.f32 %v393, %v498
  %500 = vmatprep.mubr.f32.mxu0 0.0
  %v501 = vand.u32 %v50, 4294901760
  %v502 = vsub.f32 %v50, %v501
  %v503 = vand.u32 %v502, 4294901760
  %504 = vmatmul.mubr.f32.gmra.mrb[0].mxu0 %v503
  %v505 = vpop.f32.mrb[0].mxu0
  %v506 = vadd.f32 %v399, %v505
  %v507 = vpop.f32.mrb[0].mxu0
  %v508 = vadd.f32 %v401, %v507
  %509 = vmatprep.mubr.f32.mxu0 0.0
  %v510 = vand.u32 %v52, 4294901760
  %v511 = vsub.f32 %v52, %v510
  %v512 = vand.u32 %v511, 4294901760
  %513 = vmatmul.mubr.f32.gmra.mrb[0].mxu0 %v512
  %v514 = vpop.f32.mrb[0].mxu0
  %v515 = vadd.f32 %v407, %v514
  %v516 = vpop.f32.mrb[0].mxu0
  %v517 = vadd.f32 %v409, %v516
  %518 = vmatprep.mubr.f32.mxu0 0.0
  %v519 = vand.u32 %v54, 4294901760
  %v520 = vsub.f32 %v54, %v519
  %v521 = vand.u32 %v520, 4294901760
  %522 = vmatmul.mubr.f32.gmra.mrb[0].mxu0 %v521
  %v523 = vpop.f32.mrb[0].mxu0
  %v524 = vadd.f32 %v415, %v523
  %v525 = vpop.f32.mrb[0].mxu0
  %v526 = vadd.f32 %v417, %v525
  %527 = vdwg.mxu0
  %v528 = vand.u32 %v12, 4294901760
  %v529 = vsub.f32 %v12, %v528
  %v530 = vand.u32 %v529, 4294901760
  %531 = vmatprep.subr.mxu0 %v530
  %v532 = vand.u32 %v11, 4294901760
  %v533 = vsub.f32 %v11, %v532
  %v534 = vand.u32 %v533, 4294901760
  %535 = vmatpush1.msra.mxu0 %v534
  %v536 = vand.u32 %v14, 4294901760
  %v537 = vsub.f32 %v14, %v536
  %v538 = vand.u32 %v537, 4294901760
  %539 = vmatprep.subr.mxu0 %v538
  %v540 = vand.u32 %v13, 4294901760
  %v541 = vsub.f32 %v13, %v540
  %v542 = vand.u32 %v541, 4294901760
  %543 = vmatpush1.msra.mxu0 %v542
  %v544 = vand.u32 %v16, 4294901760
  %v545 = vsub.f32 %v16, %v544
  %v546 = vand.u32 %v545, 4294901760
  %547 = vmatprep.subr.mxu0 %v546
  %v548 = vand.u32 %v15, 4294901760
  %v549 = vsub.f32 %v15, %v548
  %v550 = vand.u32 %v549, 4294901760
  %551 = vmatpush1.msra.mxu0 %v550
  %v552 = vand.u32 %v18, 4294901760
  %v553 = vsub.f32 %v18, %v552
  %v554 = vand.u32 %v553, 4294901760
  %555 = vmatprep.subr.mxu0 %v554
  %v556 = vand.u32 %v17, 4294901760
  %v557 = vsub.f32 %v17, %v556
  %v558 = vand.u32 %v557, 4294901760
  %559 = vmatpush1.msra.mxu0 %v558
  %560 = vmatprep.subr.mxu0 0.0
  %561 = vmatpush1.msra.mxu0 0.0
  %562 = vmatprep.subr.mxu0 0.0
  %563 = vmatpush1.msra.mxu0 0.0
  %564 = vmatprep.subr.mxu0 0.0
  %565 = vmatpush1.msra.mxu0 0.0
  %566 = vmatprep.subr.mxu0 0.0
  %567 = vmatpush1.msra.mxu0 0.0
  %568 = vmatprep.subr.mxu0 0.0
  %569 = vmatpush1.msra.mxu0 0.0
  %570 = vmatprep.subr.mxu0 0.0
  %571 = vmatpush1.msra.mxu0 0.0
  %572 = vmatprep.subr.mxu0 0.0
  %573 = vmatpush1.msra.mxu0 0.0
  %574 = vmatprep.subr.mxu0 0.0
  %575 = vmatpush1.msra.mxu0 0.0
  %576 = vmatprep.subr.mxu0 0.0
  %577 = vmatpush1.msra.mxu0 0.0
  %578 = vmatprep.subr.mxu0 0.0
  %579 = vmatpush1.msra.mxu0 0.0
  %580 = vmatprep.subr.mxu0 0.0
  %581 = vmatpush1.msra.mxu0 0.0
  %582 = vmatprep.subr.mxu0 0.0
  %583 = vmatpush1.msra.mxu0 0.0
  %584 = vmatprep.subr.mxu0 0.0
  %585 = vmatpush1.msra.mxu0 0.0
  %586 = vmatprep.subr.mxu0 0.0
  %587 = vmatpush1.msra.mxu0 0.0
  %588 = vmatprep.subr.mxu0 0.0
  %589 = vmatpush1.msra.mxu0 0.0
  %590 = vmatprep.subr.mxu0 0.0
  %591 = vmatpush1.msra.mxu0 0.0
  %592 = vmatprep.subr.mxu0 0.0
  %593 = vmatpush1.msra.mxu0 0.0
  %594 = vmatprep.subr.mxu0 0.0
  %595 = vmatpush1.msra.mxu0 0.0
  %596 = vmatprep.subr.mxu0 0.0
  %597 = vmatpush1.msra.mxu0 0.0
  %598 = vmatprep.subr.mxu0 0.0
  %599 = vmatpush1.msra.mxu0 0.0
  %600 = vmatprep.subr.mxu0 0.0
  %601 = vmatpush1.msra.mxu0 0.0
  %602 = vmatprep.subr.mxu0 0.0
  %603 = vmatpush1.msra.mxu0 0.0
  %604 = vmatprep.subr.mxu0 0.0
  %605 = vmatpush1.msra.mxu0 0.0
  %606 = vmatprep.subr.mxu0 0.0
  %607 = vmatpush1.msra.mxu0 0.0
  %608 = vmatprep.subr.mxu0 0.0
  %609 = vmatpush1.msra.mxu0 0.0
  %610 = vmatprep.subr.mxu0 0.0
  %611 = vmatpush1.msra.mxu0 0.0
  %612 = vmatprep.subr.mxu0 0.0
  %613 = vmatpush1.msra.mxu0 0.0
  %614 = vmatprep.subr.mxu0 0.0
  %615 = vmatpush1.msra.mxu0 0.0
  %616 = vmatprep.mubr.f32.mxu0 0.0
  %v617 = vand.u32 %v48, 4294901760
  %618 = vmatmul.mubr.f32.gmra.mrb[0].mxu0 %v617
  %v619 = vpop.f32.mrb[0].mxu0
  %v620 = vadd.f32 %v497, %v619
  %v621 = vpop.f32.mrb[0].mxu0
  %v622 = vadd.f32 %v499, %v621
  %623 = vmatprep.mubr.f32.mxu0 0.0
  %v624 = vand.u32 %v50, 4294901760
  %625 = vmatmul.mubr.f32.gmra.mrb[0].mxu0 %v624
  %v626 = vpop.f32.mrb[0].mxu0
  %v627 = vadd.f32 %v506, %v626
  %v628 = vpop.f32.mrb[0].mxu0
  %v629 = vadd.f32 %v508, %v628
  %630 = vmatprep.mubr.f32.mxu0 0.0
  %v631 = vand.u32 %v52, 4294901760
  %632 = vmatmul.mubr.f32.gmra.mrb[0].mxu0 %v631
  %v633 = vpop.f32.mrb[0].mxu0
  %v634 = vadd.f32 %v515, %v633
  %v635 = vpop.f32.mrb[0].mxu0
  %v636 = vadd.f32 %v517, %v635
  %637 = vmatprep.mubr.f32.mxu0 0.0
  %v638 = vand.u32 %v54, 4294901760
  %639 = vmatmul.mubr.f32.gmra.mrb[0].mxu0 %v638
  %v640 = vpop.f32.mrb[0].mxu0
  %v641 = vadd.f32 %v524, %v640
  %v642 = vpop.f32.mrb[0].mxu0
  %v643 = vadd.f32 %v526, %v642
  %644 = vdwg.mxu0
  %v645 = vand.u32 %v12, 4294901760
  %646 = vmatprep.subr.mxu0 %v645
  %v647 = vand.u32 %v11, 4294901760
  %648 = vmatpush1.msra.mxu0 %v647
  %v649 = vand.u32 %v14, 4294901760
  %650 = vmatprep.subr.mxu0 %v649
  %v651 = vand.u32 %v13, 4294901760
  %652 = vmatpush1.msra.mxu0 %v651
  %v653 = vand.u32 %v16, 4294901760
  %654 = vmatprep.subr.mxu0 %v653
  %v655 = vand.u32 %v15, 4294901760
  %656 = vmatpush1.msra.mxu0 %v655
  %v657 = vand.u32 %v18, 4294901760
  %658 = vmatprep.subr.mxu0 %v657
  %v659 = vand.u32 %v17, 4294901760
  %660 = vmatpush1.msra.mxu0 %v659
  %661 = vmatprep.subr.mxu0 0.0
  %662 = vmatpush1.msra.mxu0 0.0
  %663 = vmatprep.subr.mxu0 0.0
  %664 = vmatpush1.msra.mxu0 0.0
  %665 = vmatprep.subr.mxu0 0.0
  %666 = vmatpush1.msra.mxu0 0.0
  %667 = vmatprep.subr.mxu0 0.0
  %668 = vmatpush1.msra.mxu0 0.0
  %669 = vmatprep.subr.mxu0 0.0
  %670 = vmatpush1.msra.mxu0 0.0
  %671 = vmatprep.subr.mxu0 0.0
  %672 = vmatpush1.msra.mxu0 0.0
  %673 = vmatprep.subr.mxu0 0.0
  %674 = vmatpush1.msra.mxu0 0.0
  %675 = vmatprep.subr.mxu0 0.0
  %676 = vmatpush1.msra.mxu0 0.0
  %677 = vmatprep.subr.mxu0 0.0
  %678 = vmatpush1.msra.mxu0 0.0
  %679 = vmatprep.subr.mxu0 0.0
  %680 = vmatpush1.msra.mxu0 0.0
  %681 = vmatprep.subr.mxu0 0.0
  %682 = vmatpush1.msra.mxu0 0.0
  %683 = vmatprep.subr.mxu0 0.0
  %684 = vmatpush1.msra.mxu0 0.0
  %685 = vmatprep.subr.mxu0 0.0
  %686 = vmatpush1.msra.mxu0 0.0
  %687 = vmatprep.subr.mxu0 0.0
  %688 = vmatpush1.msra.mxu0 0.0
  %689 = vmatprep.subr.mxu0 0.0
  %690 = vmatpush1.msra.mxu0 0.0
  %691 = vmatprep.subr.mxu0 0.0
  %692 = vmatpush1.msra.mxu0 0.0
  %693 = vmatprep.subr.mxu0 0.0
  %694 = vmatpush1.msra.mxu0 0.0
  %695 = vmatprep.subr.mxu0 0.0
  %696 = vmatpush1.msra.mxu0 0.0
  %697 = vmatprep.subr.mxu0 0.0
  %698 = vmatpush1.msra.mxu0 0.0
  %699 = vmatprep.subr.mxu0 0.0
  %700 = vmatpush1.msra.mxu0 0.0
  %701 = vmatprep.subr.mxu0 0.0
  %702 = vmatpush1.msra.mxu0 0.0
  %703 = vmatprep.subr.mxu0 0.0
  %704 = vmatpush1.msra.mxu0 0.0
  %705 = vmatprep.subr.mxu0 0.0
  %706 = vmatpush1.msra.mxu0 0.0
  %707 = vmatprep.subr.mxu0 0.0
  %708 = vmatpush1.msra.mxu0 0.0
  %709 = vmatprep.subr.mxu0 0.0
  %710 = vmatpush1.msra.mxu0 0.0
  %711 = vmatprep.subr.mxu0 0.0
  %712 = vmatpush1.msra.mxu0 0.0
  %713 = vmatprep.subr.mxu0 0.0
  %714 = vmatpush1.msra.mxu0 0.0
  %715 = vmatprep.subr.mxu0 0.0
  %716 = vmatpush1.msra.mxu0 0.0
  %717 = vmatprep.mubr.f32.mxu0 0.0
  %v718 = vand.u32 %v48, 4294901760
  %719 = vmatmul.mubr.f32.gmra.mrb[0].mxu0 %v718
  %v720 = vpop.f32.mrb[0].mxu0
  %v721 = vadd.f32 %v620, %v720
  %v722 = vpop.f32.mrb[0].mxu0
  %v723 = vadd.f32 %v622, %v722
  %724 = vmatprep.mubr.f32.mxu0 0.0
  %v725 = vand.u32 %v50, 4294901760
  %726 = vmatmul.mubr.f32.gmra.mrb[0].mxu0 %v725
  %v727 = vpop.f32.mrb[0].mxu0
  %v728 = vadd.f32 %v627, %v727
  %v729 = vpop.f32.mrb[0].mxu0
  %v730 = vadd.f32 %v629, %v729
  %731 = vmatprep.mubr.f32.mxu0 0.0
  %v732 = vand.u32 %v52, 4294901760
  %733 = vmatmul.mubr.f32.gmra.mrb[0].mxu0 %v732
  %v734 = vpop.f32.mrb[0].mxu0
  %v735 = vadd.f32 %v634, %v734
  %v736 = vpop.f32.mrb[0].mxu0
  %v737 = vadd.f32 %v636, %v736
  %738 = vmatprep.mubr.f32.mxu0 0.0
  %v739 = vand.u32 %v54, 4294901760
  %740 = vmatmul.mubr.f32.gmra.mrb[0].mxu0 %v739
  %v741 = vpop.f32.mrb[0].mxu0
  %v742 = vadd.f32 %v641, %v741
  %v743 = vpop.f32.mrb[0].mxu0
  %v744 = vadd.f32 %v643, %v743
  %745 = vdwg.mxu0
  %v746 = vmax.f32 %v721, 0.0
  %v747 = vmax.f32 %v723, 0.0
  %v748 = vmax.f32 %v728, 0.0
  %v749 = vmax.f32 %v730, 0.0
  %v750 = vmax.f32 %v735, 0.0
  %v751 = vmax.f32 %v737, 0.0
  %v752 = vmax.f32 %v742, 0.0
  %v753 = vmax.f32 %v744, 0.0
  %755 = vset.pattern.permute.xlu0 32
  %756 = vperm.xlu0 %755, %v23
  %v757 = vpop.permute.xlu0 %756
  %760 = vset.pattern.permute.xlu0 32
  %761 = vperm.xlu0 %760, %v24
  %v762 = vpop.permute.xlu0 %761
  %765 = vset.pattern.permute.xlu0 32
  %766 = vperm.xlu0 %765, %v25
  %v767 = vpop.permute.xlu0 %766
  %770 = vset.pattern.permute.xlu0 32
  %771 = vperm.xlu0 %770, %v26
  %v772 = vpop.permute.xlu0 %771
  %v774 = vsel %vm47, %v23, 0
  %v776 = vsel %vm47, %v24, 0
  %v778 = vsel %vm47, %v25, 0
  %v780 = vsel %vm47, %v26, 0
  %v782 = vand.u32 %v747, 4294901760
  %783 = vmatprep.subr.mxu0 %v782
  %v784 = vand.u32 %v746, 4294901760
  %785 = vmatpush1.msra.mxu0 %v784
  %v786 = vand.u32 %v749, 4294901760
  %787 = vmatprep.subr.mxu0 %v786
  %v788 = vand.u32 %v748, 4294901760
  %789 = vmatpush1.msra.mxu0 %v788
  %v790 = vand.u32 %v751, 4294901760
  %791 = vmatprep.subr.mxu0 %v790
  %v792 = vand.u32 %v750, 4294901760
  %793 = vmatpush1.msra.mxu0 %v792
  %v794 = vand.u32 %v753, 4294901760
  %795 = vmatprep.subr.mxu0 %v794
  %v796 = vand.u32 %v752, 4294901760
  %797 = vmatpush1.msra.mxu0 %v796
  %798 = vmatprep.subr.mxu0 0.0
  %799 = vmatpush1.msra.mxu0 0.0
  %800 = vmatprep.subr.mxu0 0.0
  %801 = vmatpush1.msra.mxu0 0.0
  %802 = vmatprep.subr.mxu0 0.0
  %803 = vmatpush1.msra.mxu0 0.0
  %804 = vmatprep.subr.mxu0 0.0
  %805 = vmatpush1.msra.mxu0 0.0
  %806 = vmatprep.subr.mxu0 0.0
  %807 = vmatpush1.msra.mxu0 0.0
  %808 = vmatprep.subr.mxu0 0.0
  %809 = vmatpush1.msra.mxu0 0.0
  %810 = vmatprep.subr.mxu0 0.0
  %811 = vmatpush1.msra.mxu0 0.0
  %812 = vmatprep.subr.mxu0 0.0
  %813 = vmatpush1.msra.mxu0 0.0
  %814 = vmatprep.subr.mxu0 0.0
  %815 = vmatpush1.msra.mxu0 0.0
  %816 = vmatprep.subr.mxu0 0.0
  %817 = vmatpush1.msra.mxu0 0.0
  %818 = vmatprep.subr.mxu0 0.0
  %819 = vmatpush1.msra.mxu0 0.0
  %820 = vmatprep.subr.mxu0 0.0
  %821 = vmatpush1.msra.mxu0 0.0
  %822 = vmatprep.subr.mxu0 0.0
  %823 = vmatpush1.msra.mxu0 0.0
  %824 = vmatprep.subr.mxu0 0.0
  %825 = vmatpush1.msra.mxu0 0.0
  %826 = vmatprep.subr.mxu0 0.0
  %827 = vmatpush1.msra.mxu0 0.0
  %828 = vmatprep.subr.mxu0 0.0
  %829 = vmatpush1.msra.mxu0 0.0
  %830 = vmatprep.subr.mxu0 0.0
  %831 = vmatpush1.msra.mxu0 0.0
  %832 = vmatprep.subr.mxu0 0.0
  %833 = vmatpush1.msra.mxu0 0.0
  %834 = vmatprep.subr.mxu0 0.0
  %835 = vmatpush1.msra.mxu0 0.0
  %836 = vmatprep.subr.mxu0 0.0
  %837 = vmatpush1.msra.mxu0 0.0
  %838 = vmatprep.subr.mxu0 0.0
  %839 = vmatpush1.msra.mxu0 0.0
  %840 = vmatprep.subr.mxu0 0.0
  %841 = vmatpush1.msra.mxu0 0.0
  %842 = vmatprep.subr.mxu0 0.0
  %843 = vmatpush1.msra.mxu0 0.0
  %844 = vmatprep.subr.mxu0 0.0
  %845 = vmatpush1.msra.mxu0 0.0
  %846 = vmatprep.subr.mxu0 0.0
  %847 = vmatpush1.msra.mxu0 0.0
  %848 = vmatprep.subr.mxu0 0.0
  %849 = vmatpush1.msra.mxu0 0.0
  %850 = vmatprep.subr.mxu0 0.0
  %851 = vmatpush1.msra.mxu0 0.0
  %852 = vmatprep.subr.mxu0 0.0
  %853 = vmatpush1.msra.mxu0 0.0
  %854 = vmatprep.mubr.f32.mxu0 0.0
  %v855 = vand.u32 %v774, 4294901760
  %v856 = vsub.f32 %v774, %v855
  %v857 = vand.u32 %v856, 4294901760
  %v858 = vsub.f32 %v856, %v857
  %v859 = vand.u32 %v858, 4294901760
  %860 = vmatmul.mubr.f32.gmra.mrb[0].mxu0 %v859
  %v861 = vpop.f32.mrb[0].mxu0
  %v862 = vadd.f32 %v757, %v861
  %v863 = vpop.f32.mrb[0].mxu0
  %v864 = vadd.f32 %v757, %v863
  %865 = vmatprep.mubr.f32.mxu0 0.0
  %v866 = vand.u32 %v776, 4294901760
  %v867 = vsub.f32 %v776, %v866
  %v868 = vand.u32 %v867, 4294901760
  %v869 = vsub.f32 %v867, %v868
  %v870 = vand.u32 %v869, 4294901760
  %871 = vmatmul.mubr.f32.gmra.mrb[0].mxu0 %v870
  %v872 = vpop.f32.mrb[0].mxu0
  %v873 = vadd.f32 %v762, %v872
  %v874 = vpop.f32.mrb[0].mxu0
  %v875 = vadd.f32 %v762, %v874
  %876 = vmatprep.mubr.f32.mxu0 0.0
  %v877 = vand.u32 %v778, 4294901760
  %v878 = vsub.f32 %v778, %v877
  %v879 = vand.u32 %v878, 4294901760
  %v880 = vsub.f32 %v878, %v879
  %v881 = vand.u32 %v880, 4294901760
  %882 = vmatmul.mubr.f32.gmra.mrb[0].mxu0 %v881
  %v883 = vpop.f32.mrb[0].mxu0
  %v884 = vadd.f32 %v767, %v883
  %v885 = vpop.f32.mrb[0].mxu0
  %v886 = vadd.f32 %v767, %v885
  %887 = vmatprep.mubr.f32.mxu0 0.0
  %v888 = vand.u32 %v780, 4294901760
  %v889 = vsub.f32 %v780, %v888
  %v890 = vand.u32 %v889, 4294901760
  %v891 = vsub.f32 %v889, %v890
  %v892 = vand.u32 %v891, 4294901760
  %893 = vmatmul.mubr.f32.gmra.mrb[0].mxu0 %v892
  %v894 = vpop.f32.mrb[0].mxu0
  %v895 = vadd.f32 %v772, %v894
  %v896 = vpop.f32.mrb[0].mxu0
  %v897 = vadd.f32 %v772, %v896
  %898 = vdwg.mxu0
  %v899 = vand.u32 %v747, 4294901760
  %v900 = vsub.f32 %v747, %v899
  %v901 = vand.u32 %v900, 4294901760
  %v902 = vsub.f32 %v900, %v901
  %v903 = vand.u32 %v902, 4294901760
  %904 = vmatprep.subr.mxu0 %v903
  %v905 = vand.u32 %v746, 4294901760
  %v906 = vsub.f32 %v746, %v905
  %v907 = vand.u32 %v906, 4294901760
  %v908 = vsub.f32 %v906, %v907
  %v909 = vand.u32 %v908, 4294901760
  %910 = vmatpush1.msra.mxu0 %v909
  %v911 = vand.u32 %v749, 4294901760
  %v912 = vsub.f32 %v749, %v911
  %v913 = vand.u32 %v912, 4294901760
  %v914 = vsub.f32 %v912, %v913
  %v915 = vand.u32 %v914, 4294901760
  %916 = vmatprep.subr.mxu0 %v915
  %v917 = vand.u32 %v748, 4294901760
  %v918 = vsub.f32 %v748, %v917
  %v919 = vand.u32 %v918, 4294901760
  %v920 = vsub.f32 %v918, %v919
  %v921 = vand.u32 %v920, 4294901760
  %922 = vmatpush1.msra.mxu0 %v921
  %v923 = vand.u32 %v751, 4294901760
  %v924 = vsub.f32 %v751, %v923
  %v925 = vand.u32 %v924, 4294901760
  %v926 = vsub.f32 %v924, %v925
  %v927 = vand.u32 %v926, 4294901760
  %928 = vmatprep.subr.mxu0 %v927
  %v929 = vand.u32 %v750, 4294901760
  %v930 = vsub.f32 %v750, %v929
  %v931 = vand.u32 %v930, 4294901760
  %v932 = vsub.f32 %v930, %v931
  %v933 = vand.u32 %v932, 4294901760
  %934 = vmatpush1.msra.mxu0 %v933
  %v935 = vand.u32 %v753, 4294901760
  %v936 = vsub.f32 %v753, %v935
  %v937 = vand.u32 %v936, 4294901760
  %v938 = vsub.f32 %v936, %v937
  %v939 = vand.u32 %v938, 4294901760
  %940 = vmatprep.subr.mxu0 %v939
  %v941 = vand.u32 %v752, 4294901760
  %v942 = vsub.f32 %v752, %v941
  %v943 = vand.u32 %v942, 4294901760
  %v944 = vsub.f32 %v942, %v943
  %v945 = vand.u32 %v944, 4294901760
  %946 = vmatpush1.msra.mxu0 %v945
  %947 = vmatprep.subr.mxu0 0.0
  %948 = vmatpush1.msra.mxu0 0.0
  %949 = vmatprep.subr.mxu0 0.0
  %950 = vmatpush1.msra.mxu0 0.0
  %951 = vmatprep.subr.mxu0 0.0
  %952 = vmatpush1.msra.mxu0 0.0
  %953 = vmatprep.subr.mxu0 0.0
  %954 = vmatpush1.msra.mxu0 0.0
  %955 = vmatprep.subr.mxu0 0.0
  %956 = vmatpush1.msra.mxu0 0.0
  %957 = vmatprep.subr.mxu0 0.0
  %958 = vmatpush1.msra.mxu0 0.0
  %959 = vmatprep.subr.mxu0 0.0
  %960 = vmatpush1.msra.mxu0 0.0
  %961 = vmatprep.subr.mxu0 0.0
  %962 = vmatpush1.msra.mxu0 0.0
  %963 = vmatprep.subr.mxu0 0.0
  %964 = vmatpush1.msra.mxu0 0.0
  %965 = vmatprep.subr.mxu0 0.0
  %966 = vmatpush1.msra.mxu0 0.0
  %967 = vmatprep.subr.mxu0 0.0
  %968 = vmatpush1.msra.mxu0 0.0
  %969 = vmatprep.subr.mxu0 0.0
  %970 = vmatpush1.msra.mxu0 0.0
  %971 = vmatprep.subr.mxu0 0.0
  %972 = vmatpush1.msra.mxu0 0.0
  %973 = vmatprep.subr.mxu0 0.0
  %974 = vmatpush1.msra.mxu0 0.0
  %975 = vmatprep.subr.mxu0 0.0
  %976 = vmatpush1.msra.mxu0 0.0
  %977 = vmatprep.subr.mxu0 0.0
  %978 = vmatpush1.msra.mxu0 0.0
  %979 = vmatprep.subr.mxu0 0.0
  %980 = vmatpush1.msra.mxu0 0.0
  %981 = vmatprep.subr.mxu0 0.0
  %982 = vmatpush1.msra.mxu0 0.0
  %983 = vmatprep.subr.mxu0 0.0
  %984 = vmatpush1.msra.mxu0 0.0
  %985 = vmatprep.subr.mxu0 0.0
  %986 = vmatpush1.msra.mxu0 0.0
  %987 = vmatprep.subr.mxu0 0.0
  %988 = vmatpush1.msra.mxu0 0.0
  %989 = vmatprep.subr.mxu0 0.0
  %990 = vmatpush1.msra.mxu0 0.0
  %991 = vmatprep.subr.mxu0 0.0
  %992 = vmatpush1.msra.mxu0 0.0
  %993 = vmatprep.subr.mxu0 0.0
  %994 = vmatpush1.msra.mxu0 0.0
  %995 = vmatprep.subr.mxu0 0.0
  %996 = vmatpush1.msra.mxu0 0.0
  %997 = vmatprep.subr.mxu0 0.0
  %998 = vmatpush1.msra.mxu0 0.0
  %999 = vmatprep.subr.mxu0 0.0
  %1000 = vmatpush1.msra.mxu0 0.0
  %1001 = vmatprep.subr.mxu0 0.0
  %1002 = vmatpush1.msra.mxu0 0.0
  %1003 = vmatprep.mubr.f32.mxu0 0.0
  %v1004 = vand.u32 %v774, 4294901760
  %1005 = vmatmul.mubr.f32.gmra.mrb[0].mxu0 %v1004
  %v1006 = vpop.f32.mrb[0].mxu0
  %v1007 = vadd.f32 %v862, %v1006
  %v1008 = vpop.f32.mrb[0].mxu0
  %v1009 = vadd.f32 %v864, %v1008
  %1010 = vmatprep.mubr.f32.mxu0 0.0
  %v1011 = vand.u32 %v776, 4294901760
  %1012 = vmatmul.mubr.f32.gmra.mrb[0].mxu0 %v1011
  %v1013 = vpop.f32.mrb[0].mxu0
  %v1014 = vadd.f32 %v873, %v1013
  %v1015 = vpop.f32.mrb[0].mxu0
  %v1016 = vadd.f32 %v875, %v1015
  %1017 = vmatprep.mubr.f32.mxu0 0.0
  %v1018 = vand.u32 %v778, 4294901760
  %1019 = vmatmul.mubr.f32.gmra.mrb[0].mxu0 %v1018
  %v1020 = vpop.f32.mrb[0].mxu0
  %v1021 = vadd.f32 %v884, %v1020
  %v1022 = vpop.f32.mrb[0].mxu0
  %v1023 = vadd.f32 %v886, %v1022
  %1024 = vmatprep.mubr.f32.mxu0 0.0
  %v1025 = vand.u32 %v780, 4294901760
  %1026 = vmatmul.mubr.f32.gmra.mrb[0].mxu0 %v1025
  %v1027 = vpop.f32.mrb[0].mxu0
  %v1028 = vadd.f32 %v895, %v1027
  %v1029 = vpop.f32.mrb[0].mxu0
  %v1030 = vadd.f32 %v897, %v1029
  %1031 = vdwg.mxu0
  %v1032 = vand.u32 %v747, 4294901760
  %v1033 = vsub.f32 %v747, %v1032
  %1034 = vmatprep.subr.mxu0 %v1033
  %v1035 = vand.u32 %v746, 4294901760
  %v1036 = vsub.f32 %v746, %v1035
  %1037 = vmatpush1.msra.mxu0 %v1036
  %v1038 = vand.u32 %v749, 4294901760
  %v1039 = vsub.f32 %v749, %v1038
  %1040 = vmatprep.subr.mxu0 %v1039
  %v1041 = vand.u32 %v748, 4294901760
  %v1042 = vsub.f32 %v748, %v1041
  %1043 = vmatpush1.msra.mxu0 %v1042
  %v1044 = vand.u32 %v751, 4294901760
  %v1045 = vsub.f32 %v751, %v1044
  %1046 = vmatprep.subr.mxu0 %v1045
  %v1047 = vand.u32 %v750, 4294901760
  %v1048 = vsub.f32 %v750, %v1047
  %1049 = vmatpush1.msra.mxu0 %v1048
  %v1050 = vand.u32 %v753, 4294901760
  %v1051 = vsub.f32 %v753, %v1050
  %1052 = vmatprep.subr.mxu0 %v1051
  %v1053 = vand.u32 %v752, 4294901760
  %v1054 = vsub.f32 %v752, %v1053
  %1055 = vmatpush1.msra.mxu0 %v1054
  %1056 = vmatprep.subr.mxu0 0.0
  %1057 = vmatpush1.msra.mxu0 0.0
  %1058 = vmatprep.subr.mxu0 0.0
  %1059 = vmatpush1.msra.mxu0 0.0
  %1060 = vmatprep.subr.mxu0 0.0
  %1061 = vmatpush1.msra.mxu0 0.0
  %1062 = vmatprep.subr.mxu0 0.0
  %1063 = vmatpush1.msra.mxu0 0.0
  %1064 = vmatprep.subr.mxu0 0.0
  %1065 = vmatpush1.msra.mxu0 0.0
  %1066 = vmatprep.subr.mxu0 0.0
  %1067 = vmatpush1.msra.mxu0 0.0
  %1068 = vmatprep.subr.mxu0 0.0
  %1069 = vmatpush1.msra.mxu0 0.0
  %1070 = vmatprep.subr.mxu0 0.0
  %1071 = vmatpush1.msra.mxu0 0.0
  %1072 = vmatprep.subr.mxu0 0.0
  %1073 = vmatpush1.msra.mxu0 0.0
  %1074 = vmatprep.subr.mxu0 0.0
  %1075 = vmatpush1.msra.mxu0 0.0
  %1076 = vmatprep.subr.mxu0 0.0
  %1077 = vmatpush1.msra.mxu0 0.0
  %1078 = vmatprep.subr.mxu0 0.0
  %1079 = vmatpush1.msra.mxu0 0.0
  %1080 = vmatprep.subr.mxu0 0.0
  %1081 = vmatpush1.msra.mxu0 0.0
  %1082 = vmatprep.subr.mxu0 0.0
  %1083 = vmatpush1.msra.mxu0 0.0
  %1084 = vmatprep.subr.mxu0 0.0
  %1085 = vmatpush1.msra.mxu0 0.0
  %1086 = vmatprep.subr.mxu0 0.0
  %1087 = vmatpush1.msra.mxu0 0.0
  %1088 = vmatprep.subr.mxu0 0.0
  %1089 = vmatpush1.msra.mxu0 0.0
  %1090 = vmatprep.subr.mxu0 0.0
  %1091 = vmatpush1.msra.mxu0 0.0
  %1092 = vmatprep.subr.mxu0 0.0
  %1093 = vmatpush1.msra.mxu0 0.0
  %1094 = vmatprep.subr.mxu0 0.0
  %1095 = vmatpush1.msra.mxu0 0.0
  %1096 = vmatprep.subr.mxu0 0.0
  %1097 = vmatpush1.msra.mxu0 0.0
  %1098 = vmatprep.subr.mxu0 0.0
  %1099 = vmatpush1.msra.mxu0 0.0
  %1100 = vmatprep.subr.mxu0 0.0
  %1101 = vmatpush1.msra.mxu0 0.0
  %1102 = vmatprep.subr.mxu0 0.0
  %1103 = vmatpush1.msra.mxu0 0.0
  %1104 = vmatprep.subr.mxu0 0.0
  %1105 = vmatpush1.msra.mxu0 0.0
  %1106 = vmatprep.subr.mxu0 0.0
  %1107 = vmatpush1.msra.mxu0 0.0
  %1108 = vmatprep.subr.mxu0 0.0
  %1109 = vmatpush1.msra.mxu0 0.0
  %1110 = vmatprep.subr.mxu0 0.0
  %1111 = vmatpush1.msra.mxu0 0.0
  %1112 = vmatprep.mubr.f32.mxu0 0.0
  %v1113 = vand.u32 %v774, 4294901760
  %v1114 = vsub.f32 %v774, %v1113
  %1115 = vmatmul.mubr.f32.gmra.mrb[0].mxu0 %v1114
  %v1116 = vpop.f32.mrb[0].mxu0
  %v1117 = vadd.f32 %v1007, %v1116
  %v1118 = vpop.f32.mrb[0].mxu0
  %v1119 = vadd.f32 %v1009, %v1118
  %1120 = vmatprep.mubr.f32.mxu0 0.0
  %v1121 = vand.u32 %v776, 4294901760
  %v1122 = vsub.f32 %v776, %v1121
  %1123 = vmatmul.mubr.f32.gmra.mrb[0].mxu0 %v1122
  %v1124 = vpop.f32.mrb[0].mxu0
  %v1125 = vadd.f32 %v1014, %v1124
  %v1126 = vpop.f32.mrb[0].mxu0
  %v1127 = vadd.f32 %v1016, %v1126
  %1128 = vmatprep.mubr.f32.mxu0 0.0
  %v1129 = vand.u32 %v778, 4294901760
  %v1130 = vsub.f32 %v778, %v1129
  %1131 = vmatmul.mubr.f32.gmra.mrb[0].mxu0 %v1130
  %v1132 = vpop.f32.mrb[0].mxu0
  %v1133 = vadd.f32 %v1021, %v1132
  %v1134 = vpop.f32.mrb[0].mxu0
  %v1135 = vadd.f32 %v1023, %v1134
  %1136 = vmatprep.mubr.f32.mxu0 0.0
  %v1137 = vand.u32 %v780, 4294901760
  %v1138 = vsub.f32 %v780, %v1137
  %1139 = vmatmul.mubr.f32.gmra.mrb[0].mxu0 %v1138
  %v1140 = vpop.f32.mrb[0].mxu0
  %v1141 = vadd.f32 %v1028, %v1140
  %v1142 = vpop.f32.mrb[0].mxu0
  %v1143 = vadd.f32 %v1030, %v1142
  %1144 = vdwg.mxu0
  %v1145 = vand.u32 %v747, 4294901760
  %1146 = vmatprep.subr.mxu0 %v1145
  %v1147 = vand.u32 %v746, 4294901760
  %1148 = vmatpush1.msra.mxu0 %v1147
  %v1149 = vand.u32 %v749, 4294901760
  %1150 = vmatprep.subr.mxu0 %v1149
  %v1151 = vand.u32 %v748, 4294901760
  %1152 = vmatpush1.msra.mxu0 %v1151
  %v1153 = vand.u32 %v751, 4294901760
  %1154 = vmatprep.subr.mxu0 %v1153
  %v1155 = vand.u32 %v750, 4294901760
  %1156 = vmatpush1.msra.mxu0 %v1155
  %v1157 = vand.u32 %v753, 4294901760
  %1158 = vmatprep.subr.mxu0 %v1157
  %v1159 = vand.u32 %v752, 4294901760
  %1160 = vmatpush1.msra.mxu0 %v1159
  %1161 = vmatprep.subr.mxu0 0.0
  %1162 = vmatpush1.msra.mxu0 0.0
  %1163 = vmatprep.subr.mxu0 0.0
  %1164 = vmatpush1.msra.mxu0 0.0
  %1165 = vmatprep.subr.mxu0 0.0
  %1166 = vmatpush1.msra.mxu0 0.0
  %1167 = vmatprep.subr.mxu0 0.0
  %1168 = vmatpush1.msra.mxu0 0.0
  %1169 = vmatprep.subr.mxu0 0.0
  %1170 = vmatpush1.msra.mxu0 0.0
  %1171 = vmatprep.subr.mxu0 0.0
  %1172 = vmatpush1.msra.mxu0 0.0
  %1173 = vmatprep.subr.mxu0 0.0
  %1174 = vmatpush1.msra.mxu0 0.0
  %1175 = vmatprep.subr.mxu0 0.0
  %1176 = vmatpush1.msra.mxu0 0.0
  %1177 = vmatprep.subr.mxu0 0.0
  %1178 = vmatpush1.msra.mxu0 0.0
  %1179 = vmatprep.subr.mxu0 0.0
  %1180 = vmatpush1.msra.mxu0 0.0
  %1181 = vmatprep.subr.mxu0 0.0
  %1182 = vmatpush1.msra.mxu0 0.0
  %1183 = vmatprep.subr.mxu0 0.0
  %1184 = vmatpush1.msra.mxu0 0.0
  %1185 = vmatprep.subr.mxu0 0.0
  %1186 = vmatpush1.msra.mxu0 0.0
  %1187 = vmatprep.subr.mxu0 0.0
  %1188 = vmatpush1.msra.mxu0 0.0
  %1189 = vmatprep.subr.mxu0 0.0
  %1190 = vmatpush1.msra.mxu0 0.0
  %1191 = vmatprep.subr.mxu0 0.0
  %1192 = vmatpush1.msra.mxu0 0.0
  %1193 = vmatprep.subr.mxu0 0.0
  %1194 = vmatpush1.msra.mxu0 0.0
  %1195 = vmatprep.subr.mxu0 0.0
  %1196 = vmatpush1.msra.mxu0 0.0
  %1197 = vmatprep.subr.mxu0 0.0
  %1198 = vmatpush1.msra.mxu0 0.0
  %1199 = vmatprep.subr.mxu0 0.0
  %1200 = vmatpush1.msra.mxu0 0.0
  %1201 = vmatprep.subr.mxu0 0.0
  %1202 = vmatpush1.msra.mxu0 0.0
  %1203 = vmatprep.subr.mxu0 0.0
  %1204 = vmatpush1.msra.mxu0 0.0
  %1205 = vmatprep.subr.mxu0 0.0
  %1206 = vmatpush1.msra.mxu0 0.0
  %1207 = vmatprep.subr.mxu0 0.0
  %1208 = vmatpush1.msra.mxu0 0.0
  %1209 = vmatprep.subr.mxu0 0.0
  %1210 = vmatpush1.msra.mxu0 0.0
  %1211 = vmatprep.subr.mxu0 0.0
  %1212 = vmatpush1.msra.mxu0 0.0
  %1213 = vmatprep.subr.mxu0 0.0
  %1214 = vmatpush1.msra.mxu0 0.0
  %1215 = vmatprep.subr.mxu0 0.0
  %1216 = vmatpush1.msra.mxu0 0.0
  %1217 = vmatprep.mubr.f32.mxu0 0.0
  %v1218 = vand.u32 %v774, 4294901760
  %v1219 = vsub.f32 %v774, %v1218
  %v1220 = vand.u32 %v1219, 4294901760
  %1221 = vmatmul.mubr.f32.gmra.mrb[0].mxu0 %v1220
  %v1222 = vpop.f32.mrb[0].mxu0
  %v1223 = vadd.f32 %v1117, %v1222
  %v1224 = vpop.f32.mrb[0].mxu0
  %v1225 = vadd.f32 %v1119, %v1224
  %1226 = vmatprep.mubr.f32.mxu0 0.0
  %v1227 = vand.u32 %v776, 4294901760
  %v1228 = vsub.f32 %v776, %v1227
  %v1229 = vand.u32 %v1228, 4294901760
  %1230 = vmatmul.mubr.f32.gmra.mrb[0].mxu0 %v1229
  %v1231 = vpop.f32.mrb[0].mxu0
  %v1232 = vadd.f32 %v1125, %v1231
  %v1233 = vpop.f32.mrb[0].mxu0
  %v1234 = vadd.f32 %v1127, %v1233
  %1235 = vmatprep.mubr.f32.mxu0 0.0
  %v1236 = vand.u32 %v778, 4294901760
  %v1237 = vsub.f32 %v778, %v1236
  %v1238 = vand.u32 %v1237, 4294901760
  %1239 = vmatmul.mubr.f32.gmra.mrb[0].mxu0 %v1238
  %v1240 = vpop.f32.mrb[0].mxu0
  %v1241 = vadd.f32 %v1133, %v1240
  %v1242 = vpop.f32.mrb[0].mxu0
  %v1243 = vadd.f32 %v1135, %v1242
  %1244 = vmatprep.mubr.f32.mxu0 0.0
  %v1245 = vand.u32 %v780, 4294901760
  %v1246 = vsub.f32 %v780, %v1245
  %v1247 = vand.u32 %v1246, 4294901760
  %1248 = vmatmul.mubr.f32.gmra.mrb[0].mxu0 %v1247
  %v1249 = vpop.f32.mrb[0].mxu0
  %v1250 = vadd.f32 %v1141, %v1249
  %v1251 = vpop.f32.mrb[0].mxu0
  %v1252 = vadd.f32 %v1143, %v1251
  %1253 = vdwg.mxu0
  %v1254 = vand.u32 %v747, 4294901760
  %v1255 = vsub.f32 %v747, %v1254
  %v1256 = vand.u32 %v1255, 4294901760
  %1257 = vmatprep.subr.mxu0 %v1256
  %v1258 = vand.u32 %v746, 4294901760
  %v1259 = vsub.f32 %v746, %v1258
  %v1260 = vand.u32 %v1259, 4294901760
  %1261 = vmatpush1.msra.mxu0 %v1260
  %v1262 = vand.u32 %v749, 4294901760
  %v1263 = vsub.f32 %v749, %v1262
  %v1264 = vand.u32 %v1263, 4294901760
  %1265 = vmatprep.subr.mxu0 %v1264
  %v1266 = vand.u32 %v748, 4294901760
  %v1267 = vsub.f32 %v748, %v1266
  %v1268 = vand.u32 %v1267, 4294901760
  %1269 = vmatpush1.msra.mxu0 %v1268
  %v1270 = vand.u32 %v751, 4294901760
  %v1271 = vsub.f32 %v751, %v1270
  %v1272 = vand.u32 %v1271, 4294901760
  %1273 = vmatprep.subr.mxu0 %v1272
  %v1274 = vand.u32 %v750, 4294901760
  %v1275 = vsub.f32 %v750, %v1274
  %v1276 = vand.u32 %v1275, 4294901760
  %1277 = vmatpush1.msra.mxu0 %v1276
  %v1278 = vand.u32 %v753, 4294901760
  %v1279 = vsub.f32 %v753, %v1278
  %v1280 = vand.u32 %v1279, 4294901760
  %1281 = vmatprep.subr.mxu0 %v1280
  %v1282 = vand.u32 %v752, 4294901760
  %v1283 = vsub.f32 %v752, %v1282
  %v1284 = vand.u32 %v1283, 4294901760
  %1285 = vmatpush1.msra.mxu0 %v1284
  %1286 = vmatprep.subr.mxu0 0.0
  %1287 = vmatpush1.msra.mxu0 0.0
  %1288 = vmatprep.subr.mxu0 0.0
  %1289 = vmatpush1.msra.mxu0 0.0
  %1290 = vmatprep.subr.mxu0 0.0
  %1291 = vmatpush1.msra.mxu0 0.0
  %1292 = vmatprep.subr.mxu0 0.0
  %1293 = vmatpush1.msra.mxu0 0.0
  %1294 = vmatprep.subr.mxu0 0.0
  %1295 = vmatpush1.msra.mxu0 0.0
  %1296 = vmatprep.subr.mxu0 0.0
  %1297 = vmatpush1.msra.mxu0 0.0
  %1298 = vmatprep.subr.mxu0 0.0
  %1299 = vmatpush1.msra.mxu0 0.0
  %1300 = vmatprep.subr.mxu0 0.0
  %1301 = vmatpush1.msra.mxu0 0.0
  %1302 = vmatprep.subr.mxu0 0.0
  %1303 = vmatpush1.msra.mxu0 0.0
  %1304 = vmatprep.subr.mxu0 0.0
  %1305 = vmatpush1.msra.mxu0 0.0
  %1306 = vmatprep.subr.mxu0 0.0
  %1307 = vmatpush1.msra.mxu0 0.0
  %1308 = vmatprep.subr.mxu0 0.0
  %1309 = vmatpush1.msra.mxu0 0.0
  %1310 = vmatprep.subr.mxu0 0.0
  %1311 = vmatpush1.msra.mxu0 0.0
  %1312 = vmatprep.subr.mxu0 0.0
  %1313 = vmatpush1.msra.mxu0 0.0
  %1314 = vmatprep.subr.mxu0 0.0
  %1315 = vmatpush1.msra.mxu0 0.0
  %1316 = vmatprep.subr.mxu0 0.0
  %1317 = vmatpush1.msra.mxu0 0.0
  %1318 = vmatprep.subr.mxu0 0.0
  %1319 = vmatpush1.msra.mxu0 0.0
  %1320 = vmatprep.subr.mxu0 0.0
  %1321 = vmatpush1.msra.mxu0 0.0
  %1322 = vmatprep.subr.mxu0 0.0
  %1323 = vmatpush1.msra.mxu0 0.0
  %1324 = vmatprep.subr.mxu0 0.0
  %1325 = vmatpush1.msra.mxu0 0.0
  %1326 = vmatprep.subr.mxu0 0.0
  %1327 = vmatpush1.msra.mxu0 0.0
  %1328 = vmatprep.subr.mxu0 0.0
  %1329 = vmatpush1.msra.mxu0 0.0
  %1330 = vmatprep.subr.mxu0 0.0
  %1331 = vmatpush1.msra.mxu0 0.0
  %1332 = vmatprep.subr.mxu0 0.0
  %1333 = vmatpush1.msra.mxu0 0.0
  %1334 = vmatprep.subr.mxu0 0.0
  %1335 = vmatpush1.msra.mxu0 0.0
  %1336 = vmatprep.subr.mxu0 0.0
  %1337 = vmatpush1.msra.mxu0 0.0
  %1338 = vmatprep.subr.mxu0 0.0
  %1339 = vmatpush1.msra.mxu0 0.0
  %1340 = vmatprep.subr.mxu0 0.0
  %1341 = vmatpush1.msra.mxu0 0.0
  %1342 = vmatprep.mubr.f32.mxu0 0.0
  %v1343 = vand.u32 %v774, 4294901760
  %1344 = vmatmul.mubr.f32.gmra.mrb[0].mxu0 %v1343
  %v1345 = vpop.f32.mrb[0].mxu0
  %v1346 = vadd.f32 %v1223, %v1345
  %v1347 = vpop.f32.mrb[0].mxu0
  %v1348 = vadd.f32 %v1225, %v1347
  %1349 = vmatprep.mubr.f32.mxu0 0.0
  %v1350 = vand.u32 %v776, 4294901760
  %1351 = vmatmul.mubr.f32.gmra.mrb[0].mxu0 %v1350
  %v1352 = vpop.f32.mrb[0].mxu0
  %v1353 = vadd.f32 %v1232, %v1352
  %v1354 = vpop.f32.mrb[0].mxu0
  %v1355 = vadd.f32 %v1234, %v1354
  %1356 = vmatprep.mubr.f32.mxu0 0.0
  %v1357 = vand.u32 %v778, 4294901760
  %1358 = vmatmul.mubr.f32.gmra.mrb[0].mxu0 %v1357
  %v1359 = vpop.f32.mrb[0].mxu0
  %v1360 = vadd.f32 %v1241, %v1359
  %v1361 = vpop.f32.mrb[0].mxu0
  %v1362 = vadd.f32 %v1243, %v1361
  %1363 = vmatprep.mubr.f32.mxu0 0.0
  %v1364 = vand.u32 %v780, 4294901760
  %1365 = vmatmul.mubr.f32.gmra.mrb[0].mxu0 %v1364
  %v1366 = vpop.f32.mrb[0].mxu0
  %v1367 = vadd.f32 %v1250, %v1366
  %v1368 = vpop.f32.mrb[0].mxu0
  %v1369 = vadd.f32 %v1252, %v1368
  %1370 = vdwg.mxu0
  %v1371 = vand.u32 %v747, 4294901760
  %1372 = vmatprep.subr.mxu0 %v1371
  %v1373 = vand.u32 %v746, 4294901760
  %1374 = vmatpush1.msra.mxu0 %v1373
  %v1375 = vand.u32 %v749, 4294901760
  %1376 = vmatprep.subr.mxu0 %v1375
  %v1377 = vand.u32 %v748, 4294901760
  %1378 = vmatpush1.msra.mxu0 %v1377
  %v1379 = vand.u32 %v751, 4294901760
  %1380 = vmatprep.subr.mxu0 %v1379
  %v1381 = vand.u32 %v750, 4294901760
  %1382 = vmatpush1.msra.mxu0 %v1381
  %v1383 = vand.u32 %v753, 4294901760
  %1384 = vmatprep.subr.mxu0 %v1383
  %v1385 = vand.u32 %v752, 4294901760
  %1386 = vmatpush1.msra.mxu0 %v1385
  %1387 = vmatprep.subr.mxu0 0.0
  %1388 = vmatpush1.msra.mxu0 0.0
  %1389 = vmatprep.subr.mxu0 0.0
  %1390 = vmatpush1.msra.mxu0 0.0
  %1391 = vmatprep.subr.mxu0 0.0
  %1392 = vmatpush1.msra.mxu0 0.0
  %1393 = vmatprep.subr.mxu0 0.0
  %1394 = vmatpush1.msra.mxu0 0.0
  %1395 = vmatprep.subr.mxu0 0.0
  %1396 = vmatpush1.msra.mxu0 0.0
  %1397 = vmatprep.subr.mxu0 0.0
  %1398 = vmatpush1.msra.mxu0 0.0
  %1399 = vmatprep.subr.mxu0 0.0
  %1400 = vmatpush1.msra.mxu0 0.0
  %1401 = vmatprep.subr.mxu0 0.0
  %1402 = vmatpush1.msra.mxu0 0.0
  %1403 = vmatprep.subr.mxu0 0.0
  %1404 = vmatpush1.msra.mxu0 0.0
  %1405 = vmatprep.subr.mxu0 0.0
  %1406 = vmatpush1.msra.mxu0 0.0
  %1407 = vmatprep.subr.mxu0 0.0
  %1408 = vmatpush1.msra.mxu0 0.0
  %1409 = vmatprep.subr.mxu0 0.0
  %1410 = vmatpush1.msra.mxu0 0.0
  %1411 = vmatprep.subr.mxu0 0.0
  %1412 = vmatpush1.msra.mxu0 0.0
  %1413 = vmatprep.subr.mxu0 0.0
  %1414 = vmatpush1.msra.mxu0 0.0
  %1415 = vmatprep.subr.mxu0 0.0
  %1416 = vmatpush1.msra.mxu0 0.0
  %1417 = vmatprep.subr.mxu0 0.0
  %1418 = vmatpush1.msra.mxu0 0.0
  %1419 = vmatprep.subr.mxu0 0.0
  %1420 = vmatpush1.msra.mxu0 0.0
  %1421 = vmatprep.subr.mxu0 0.0
  %1422 = vmatpush1.msra.mxu0 0.0
  %1423 = vmatprep.subr.mxu0 0.0
  %1424 = vmatpush1.msra.mxu0 0.0
  %1425 = vmatprep.subr.mxu0 0.0
  %1426 = vmatpush1.msra.mxu0 0.0
  %1427 = vmatprep.subr.mxu0 0.0
  %1428 = vmatpush1.msra.mxu0 0.0
  %1429 = vmatprep.subr.mxu0 0.0
  %1430 = vmatpush1.msra.mxu0 0.0
  %1431 = vmatprep.subr.mxu0 0.0
  %1432 = vmatpush1.msra.mxu0 0.0
  %1433 = vmatprep.subr.mxu0 0.0
  %1434 = vmatpush1.msra.mxu0 0.0
  %1435 = vmatprep.subr.mxu0 0.0
  %1436 = vmatpush1.msra.mxu0 0.0
  %1437 = vmatprep.subr.mxu0 0.0
  %1438 = vmatpush1.msra.mxu0 0.0
  %1439 = vmatprep.subr.mxu0 0.0
  %1440 = vmatpush1.msra.mxu0 0.0
  %1441 = vmatprep.subr.mxu0 0.0
  %1442 = vmatpush1.msra.mxu0 0.0
  %1443 = vmatprep.mubr.f32.mxu0 0.0
  %v1444 = vand.u32 %v774, 4294901760
  %1445 = vmatmul.mubr.f32.gmra.mrb[0].mxu0 %v1444
  %v1446 = vpop.f32.mrb[0].mxu0
  %v1447 = vadd.f32 %v1346, %v1446
  %v1448 = vpop.f32.mrb[0].mxu0
  %v1449 = vadd.f32 %v1348, %v1448
  %1450 = vmatprep.mubr.f32.mxu0 0.0
  %v1451 = vand.u32 %v776, 4294901760
  %1452 = vmatmul.mubr.f32.gmra.mrb[0].mxu0 %v1451
  %v1453 = vpop.f32.mrb[0].mxu0
  %v1454 = vadd.f32 %v1353, %v1453
  %v1455 = vpop.f32.mrb[0].mxu0
  %v1456 = vadd.f32 %v1355, %v1455
  %1457 = vmatprep.mubr.f32.mxu0 0.0
  %v1458 = vand.u32 %v778, 4294901760
  %1459 = vmatmul.mubr.f32.gmra.mrb[0].mxu0 %v1458
  %v1460 = vpop.f32.mrb[0].mxu0
  %v1461 = vadd.f32 %v1360, %v1460
  %v1462 = vpop.f32.mrb[0].mxu0
  %v1463 = vadd.f32 %v1362, %v1462
  %1464 = vmatprep.mubr.f32.mxu0 0.0
  %v1465 = vand.u32 %v780, 4294901760
  %1466 = vmatmul.mubr.f32.gmra.mrb[0].mxu0 %v1465
  %v1467 = vpop.f32.mrb[0].mxu0
  %v1468 = vadd.f32 %v1367, %v1467
  %v1469 = vpop.f32.mrb[0].mxu0
  %v1470 = vadd.f32 %v1369, %v1469
  %1471 = vdwg.mxu0
  %1472 = vadd.xlane.f32.xlu0 %v1447
  %v1473 = vpop.xlane.xlu0 %1472
  %1474 = vadd.xlane.f32.xlu0 %v1454
  %v1475 = vpop.xlane.xlu0 %1474
  %1476 = vadd.xlane.f32.xlu0 %v1461
  %v1477 = vpop.xlane.xlu0 %1476
  %1478 = vadd.xlane.f32.xlu0 %v1468
  %v1479 = vpop.xlane.xlu0 %1478
  %v1480 = vrcp.pop 128.0
  %v1481 = vmul.f32 %v1473, %v1480
  %v1482 = vmul.f32 %v1475, %v1480
  %v1483 = vmul.f32 %v1477, %v1480
  %v1484 = vmul.f32 %v1479, %v1480
  %v1485 = vmul.f32 %v19, %v1481
  %v1486 = vmul.f32 %v20, %v1482
  %v1487 = vmul.f32 %v21, %v1483
  %v1488 = vmul.f32 %v22, %v1484
  %1493 = vrot.lane.b32.xlu0 %v1485, 88
  %v1494 = vpop.permute.xlu0 %1493
  %1495 = vrot.lane.b32.xlu0 %v1486, 88
  %v1496 = vpop.permute.xlu0 %1495
  %1497 = vrot.lane.b32.xlu0 %v1487, 88
  %v1498 = vpop.permute.xlu0 %1497
  %1499 = vrot.lane.b32.xlu0 %v1488, 88
  %v1500 = vpop.permute.xlu0 %1499
  %vm1505 = vcmask 7168
  %v1506 = vsel %vm1505, %v1494, 0.0
  %v1507 = vsel %vm1505, %v1496, 0.0
  %v1508 = vadd.f32 %v1506, %v1507
  %v1509 = vsel %vm1505, %v1498, 0.0
  %v1510 = vadd.f32 %v1508, %v1509
  %v1511 = vsel %vm1505, %v1500, 0.0
  %v1512 = vadd.f32 %v1510, %v1511
  %1513 = vadd.xlane.f32.xlu0 %v1512
  %v1514 = vpop.xlane.xlu0 %1513
  %v1515 = vrot.slane %v1514, 4
  %v1516 = vadd.f32 %v1514, %v1515
  %v1517 = vrot.slane %v1516, 2
  %v1518 = vadd.f32 %v1516, %v1517
  %v1519 = vrot.slane %v1518, 1
  %v1520 = vadd.f32 %v1518, %v1519
  %s1521 = vtos %v1520
  %v1522 = vstv %s1521
  %v1523 = vmax.f32 %v1522, 0.0
  %v1524 = vmul.f32 %v19, %v1523
  %v1525 = vmul.f32 %v20, %v1523
  %v1526 = vmul.f32 %v21, %v1523
  %v1527 = vmul.f32 %v22, %v1523
  %v1528 = vadd.f32 %v1524, 0.0
  %v1529 = vadd.f32 %v1525, 0.0
  %v1530 = vadd.f32 %v1526, 0.0
  %v1531 = vadd.f32 %v1527, 0.0
  %1532 = vrot.lane.b32.xlu0 %v1485, 87
  %v1533 = vpop.permute.xlu0 %1532
  %1534 = vrot.lane.b32.xlu0 %v1486, 87
  %v1535 = vpop.permute.xlu0 %1534
  %1536 = vrot.lane.b32.xlu0 %v1487, 87
  %v1537 = vpop.permute.xlu0 %1536
  %1538 = vrot.lane.b32.xlu0 %v1488, 87
  %v1539 = vpop.permute.xlu0 %1538
  %v1544 = vsel %vm1505, %v1533, 0.0
  %v1545 = vsel %vm1505, %v1535, 0.0
  %v1546 = vadd.f32 %v1544, %v1545
  %v1547 = vsel %vm1505, %v1537, 0.0
  %v1548 = vadd.f32 %v1546, %v1547
  %v1549 = vsel %vm1505, %v1539, 0.0
  %v1550 = vadd.f32 %v1548, %v1549
  %1551 = vadd.xlane.f32.xlu0 %v1550
  %v1552 = vpop.xlane.xlu0 %1551
  %v1553 = vrot.slane %v1552, 4
  %v1554 = vadd.f32 %v1552, %v1553
  %v1555 = vrot.slane %v1554, 2
  %v1556 = vadd.f32 %v1554, %v1555
  %v1557 = vrot.slane %v1556, 1
  %v1558 = vadd.f32 %v1556, %v1557
  %s1559 = vtos %v1558
  %v1560 = vstv %s1559
  %v1561 = vmax.f32 %v1560, 0.0
  %v1562 = vmul.f32 %v19, %v1561
  %v1563 = vmul.f32 %v20, %v1561
  %v1564 = vmul.f32 %v21, %v1561
  %v1565 = vmul.f32 %v22, %v1561
  %1570 = vrot.lane.b32.xlu0 %v1562, 127
  %v1571 = vpop.permute.xlu0 %1570
  %1572 = vrot.lane.b32.xlu0 %v1563, 127
  %v1573 = vpop.permute.xlu0 %1572
  %1574 = vrot.lane.b32.xlu0 %v1564, 127
  %v1575 = vpop.permute.xlu0 %1574
  %1576 = vrot.lane.b32.xlu0 %v1565, 127
  %v1577 = vpop.permute.xlu0 %1576
  %v1582 = vadd.f32 %v1528, %v1571
  %v1583 = vadd.f32 %v1529, %v1573
  %v1584 = vadd.f32 %v1530, %v1575
  %v1585 = vadd.f32 %v1531, %v1577
  %v1586 = vsub.f32 0.0, %v1582
  %v1587 = vsub.f32 0.0, %v1583
  %v1588 = vsub.f32 0.0, %v1584
  %v1589 = vsub.f32 0.0, %v1585
  %v1590 = vmul.f32 %v1586, 1.442695
  %v1591 = vpow.pop %v1590
  %v1592 = vmul.f32 %v1587, 1.442695
  %v1593 = vpow.pop %v1592
  %v1594 = vmul.f32 %v1588, 1.442695
  %v1595 = vpow.pop %v1594
  %v1596 = vmul.f32 %v1589, 1.442695
  %v1597 = vpow.pop %v1596
  %v1598 = vadd.f32 %v1591, 1.0
  %v1599 = vadd.f32 %v1593, 1.0
  %v1600 = vadd.f32 %v1595, 1.0
  %v1601 = vadd.f32 %v1597, 1.0
  %v1602 = vrcp.pop %v1598
  %v1603 = vmul.f32 1.0, %v1602
  %v1604 = vrcp.pop %v1599
  %v1605 = vmul.f32 1.0, %v1604
  %v1606 = vrcp.pop %v1600
  %v1607 = vmul.f32 1.0, %v1606
  %v1608 = vrcp.pop %v1601
  %v1609 = vmul.f32 1.0, %v1608
  %1611 = vset.pattern.permute.xlu0 48
  %1612 = vperm.xlu0 %1611, %v1603
  %v1613 = vpop.permute.xlu0 %1612
  %1616 = vset.pattern.permute.xlu0 48
  %1617 = vperm.xlu0 %1616, %v1605
  %v1618 = vpop.permute.xlu0 %1617
  %1621 = vset.pattern.permute.xlu0 48
  %1622 = vperm.xlu0 %1621, %v1607
  %v1623 = vpop.permute.xlu0 %1622
  %1626 = vset.pattern.permute.xlu0 48
  %1627 = vperm.xlu0 %1626, %v1609
  %v1628 = vpop.permute.xlu0 %1627
  %v1630 = vmul.f32 %v1447, %v1613
  %v1631 = vmul.f32 %v1454, %v1618
  %v1632 = vmul.f32 %v1461, %v1623
  %v1633 = vmul.f32 %v1468, %v1628
  %v1634 = vadd.f32 %v1630, %v11
  %v1635 = vadd.f32 %v1631, %v13
  %v1636 = vadd.f32 %v1632, %v15
  %v1637 = vadd.f32 %v1633, %v17
  %v1638 = vmax.f32 %v1634, 0.0
  %v1639 = vmax.f32 %v1635, 0.0
  %v1640 = vmax.f32 %v1636, 0.0
  %v1641 = vmax.f32 %v1637, 0.0
  %1642 = vst [vmem:[%s2] sm:$0xff] %v1638
  %1643 = vst [vmem:[%s2 + $0x10] sm:$0xff] %v1639
  %1644 = vst [vmem:[%s2 + $0x20] sm:$0xff] %v1640
  %1645 = vst [vmem:[%s2 + $0x30] sm:$0xff] %v1641
  %1646 = vadd.xlane.f32.xlu0 %v1449
  %v1647 = vpop.xlane.xlu0 %1646
  %1648 = vadd.xlane.f32.xlu0 %v1456
  %v1649 = vpop.xlane.xlu0 %1648
  %1650 = vadd.xlane.f32.xlu0 %v1463
  %v1651 = vpop.xlane.xlu0 %1650
  %1652 = vadd.xlane.f32.xlu0 %v1470
  %v1653 = vpop.xlane.xlu0 %1652
  %v1654 = vmul.f32 %v1647, %v1480
  %v1655 = vmul.f32 %v1649, %v1480
  %v1656 = vmul.f32 %v1651, %v1480
  %v1657 = vmul.f32 %v1653, %v1480
  %v1658 = vmul.f32 %v19, %v1654
  %v1659 = vmul.f32 %v20, %v1655
  %v1660 = vmul.f32 %v21, %v1656
  %v1661 = vmul.f32 %v22, %v1657
  %1666 = vrot.lane.b32.xlu0 %v1658, 88
  %v1667 = vpop.permute.xlu0 %1666
  %1668 = vrot.lane.b32.xlu0 %v1659, 88
  %v1669 = vpop.permute.xlu0 %1668
  %1670 = vrot.lane.b32.xlu0 %v1660, 88
  %v1671 = vpop.permute.xlu0 %1670
  %1672 = vrot.lane.b32.xlu0 %v1661, 88
  %v1673 = vpop.permute.xlu0 %1672
  %v1678 = vsel %vm1505, %v1667, 0.0
  %v1679 = vsel %vm1505, %v1669, 0.0
  %v1680 = vadd.f32 %v1678, %v1679
  %v1681 = vsel %vm1505, %v1671, 0.0
  %v1682 = vadd.f32 %v1680, %v1681
  %v1683 = vsel %vm1505, %v1673, 0.0
  %v1684 = vadd.f32 %v1682, %v1683
  %1685 = vadd.xlane.f32.xlu0 %v1684
  %v1686 = vpop.xlane.xlu0 %1685
  %v1687 = vrot.slane %v1686, 4
  %v1688 = vadd.f32 %v1686, %v1687
  %v1689 = vrot.slane %v1688, 2
  %v1690 = vadd.f32 %v1688, %v1689
  %v1691 = vrot.slane %v1690, 1
  %v1692 = vadd.f32 %v1690, %v1691
  %s1693 = vtos %v1692
  %v1694 = vstv %s1693
  %v1695 = vmax.f32 %v1694, 0.0
  %v1696 = vmul.f32 %v19, %v1695
  %v1697 = vmul.f32 %v20, %v1695
  %v1698 = vmul.f32 %v21, %v1695
  %v1699 = vmul.f32 %v22, %v1695
  %v1700 = vadd.f32 %v1696, 0.0
  %v1701 = vadd.f32 %v1697, 0.0
  %v1702 = vadd.f32 %v1698, 0.0
  %v1703 = vadd.f32 %v1699, 0.0
  %1704 = vrot.lane.b32.xlu0 %v1658, 87
  %v1705 = vpop.permute.xlu0 %1704
  %1706 = vrot.lane.b32.xlu0 %v1659, 87
  %v1707 = vpop.permute.xlu0 %1706
  %1708 = vrot.lane.b32.xlu0 %v1660, 87
  %v1709 = vpop.permute.xlu0 %1708
  %1710 = vrot.lane.b32.xlu0 %v1661, 87
  %v1711 = vpop.permute.xlu0 %1710
  %v1716 = vsel %vm1505, %v1705, 0.0
  %v1717 = vsel %vm1505, %v1707, 0.0
  %v1718 = vadd.f32 %v1716, %v1717
  %v1719 = vsel %vm1505, %v1709, 0.0
  %v1720 = vadd.f32 %v1718, %v1719
  %v1721 = vsel %vm1505, %v1711, 0.0
  %v1722 = vadd.f32 %v1720, %v1721
  %1723 = vadd.xlane.f32.xlu0 %v1722
  %v1724 = vpop.xlane.xlu0 %1723
  %v1725 = vrot.slane %v1724, 4
  %v1726 = vadd.f32 %v1724, %v1725
  %v1727 = vrot.slane %v1726, 2
  %v1728 = vadd.f32 %v1726, %v1727
  %v1729 = vrot.slane %v1728, 1
  %v1730 = vadd.f32 %v1728, %v1729
  %s1731 = vtos %v1730
  %v1732 = vstv %s1731
  %v1733 = vmax.f32 %v1732, 0.0
  %v1734 = vmul.f32 %v19, %v1733
  %v1735 = vmul.f32 %v20, %v1733
  %v1736 = vmul.f32 %v21, %v1733
  %v1737 = vmul.f32 %v22, %v1733
  %1742 = vrot.lane.b32.xlu0 %v1734, 127
  %v1743 = vpop.permute.xlu0 %1742
  %1744 = vrot.lane.b32.xlu0 %v1735, 127
  %v1745 = vpop.permute.xlu0 %1744
  %1746 = vrot.lane.b32.xlu0 %v1736, 127
  %v1747 = vpop.permute.xlu0 %1746
  %1748 = vrot.lane.b32.xlu0 %v1737, 127
  %v1749 = vpop.permute.xlu0 %1748
  %v1754 = vadd.f32 %v1700, %v1743
  %v1755 = vadd.f32 %v1701, %v1745
  %v1756 = vadd.f32 %v1702, %v1747
  %v1757 = vadd.f32 %v1703, %v1749
  %v1758 = vsub.f32 0.0, %v1754
  %v1759 = vsub.f32 0.0, %v1755
  %v1760 = vsub.f32 0.0, %v1756
  %v1761 = vsub.f32 0.0, %v1757
  %v1762 = vmul.f32 %v1758, 1.442695
  %v1763 = vpow.pop %v1762
  %v1764 = vmul.f32 %v1759, 1.442695
  %v1765 = vpow.pop %v1764
  %v1766 = vmul.f32 %v1760, 1.442695
  %v1767 = vpow.pop %v1766
  %v1768 = vmul.f32 %v1761, 1.442695
  %v1769 = vpow.pop %v1768
  %v1770 = vadd.f32 %v1763, 1.0
  %v1771 = vadd.f32 %v1765, 1.0
  %v1772 = vadd.f32 %v1767, 1.0
  %v1773 = vadd.f32 %v1769, 1.0
  %v1774 = vrcp.pop %v1770
  %v1775 = vmul.f32 1.0, %v1774
  %v1776 = vrcp.pop %v1771
  %v1777 = vmul.f32 1.0, %v1776
  %v1778 = vrcp.pop %v1772
  %v1779 = vmul.f32 1.0, %v1778
  %v1780 = vrcp.pop %v1773
  %v1781 = vmul.f32 1.0, %v1780
  %1783 = vset.pattern.permute.xlu0 48
  %1784 = vperm.xlu0 %1783, %v1775
  %v1785 = vpop.permute.xlu0 %1784
  %1788 = vset.pattern.permute.xlu0 48
  %1789 = vperm.xlu0 %1788, %v1777
  %v1790 = vpop.permute.xlu0 %1789
  %1793 = vset.pattern.permute.xlu0 48
  %1794 = vperm.xlu0 %1793, %v1779
  %v1795 = vpop.permute.xlu0 %1794
  %1798 = vset.pattern.permute.xlu0 48
  %1799 = vperm.xlu0 %1798, %v1781
  %v1800 = vpop.permute.xlu0 %1799
  %v1802 = vmul.f32 %v1449, %v1785
  %v1803 = vmul.f32 %v1456, %v1790
  %v1804 = vmul.f32 %v1463, %v1795
  %v1805 = vmul.f32 %v1470, %v1800
  %v1806 = vadd.f32 %v1802, %v12
  %v1807 = vadd.f32 %v1803, %v14
  %v1808 = vadd.f32 %v1804, %v16
  %v1809 = vadd.f32 %v1805, %v18
  %v1810 = vmax.f32 %v1806, 0.0
  %v1811 = vmax.f32 %v1807, 0.0
  %v1812 = vmax.f32 %v1808, 0.0
  %v1813 = vmax.f32 %v1809, 0.0
  %1814 = vst [vmem:[%s2 + $0x8] sm:$0xff] %v1810
  %1815 = vst [vmem:[%s2 + $0x18] sm:$0xff] %v1811
  %1816 = vst [vmem:[%s2 + $0x28] sm:$0xff] %v1812
  %1817 = vst [vmem:[%s2 + $0x38] sm:$0xff] %v1813
  // Predicated region
  $region10: #{run.1} parent=0 // pred_check
    _
  $region11: #{run.1} parent=0 // pred_check_branch
    %1819 = sbr.rel (0) target = $region13
  $region12: #{run.1} parent=0 // pred_region
    _
  $region13: #{run.1} parent=0 // pred_fallthru
    _
  // Predicated region
  $region14: #{run.1} parent=0 // pred_check
    _
  $region15: #{run.1} parent=0 // pred_check_branch
    %1821 = sbr.rel (0) target = $region17
  $region16: #{run.1} parent=0 // pred_region
    _
  $region17: #{run.1} parent=0 // pred_fallthru
    _

</llo_original>
